<compile_context>
chip_gen: v7x
topology: tpu7x:2x2x1
jax: 0.10.0
libtpu: 0.0.40
codegen_flags: <defaults>
</compile_context>

<pallas_src>
import math
import jax
import jax.numpy as jnp
from jax.experimental import pallas as pl
from jax.experimental.pallas import tpu as pltpu


def make_encoder_layer_kernel(S, D, H):
    hd = D // H
    eps = 1e-5

    def split_heads(t):
        # (S, D) -> (S, H, hd) -> (H, S, hd): one relayout instead of H lane slices.
        return pltpu.einshape("shd->hsd", t.reshape(S, H, hd))

    def kernel(x_ref, ln0_g, ln0_b, w_in, b_in, w_out, b_out,
               ln1_g, ln1_b, w1, b1, w2, b2, o_ref):
        x = x_ref[...]                                            # (S, D) f32

        def layer_norm(v, g_ref, b_ref):
            mu = jnp.mean(v, axis=-1, keepdims=True)
            var = jnp.mean((v - mu) ** 2, axis=-1, keepdims=True)
            return (v - mu) * jax.lax.rsqrt(var + eps) * g_ref[...] + b_ref[...]

        # ---------------- pre-norm + multi-head self attention ----------------
        xn = layer_norm(x, ln0_g, ln0_b)
        # bf16 operands, f32 accumulation; 1/sqrt(hd) already folded into w_in/b_in.
        qkv = jnp.dot(xn.astype(jnp.bfloat16), w_in[...],
                      preferred_element_type=jnp.float32) + b_in[...]   # (S, 3D) f32

        qh = split_heads(qkv[:, 0:D]).astype(jnp.bfloat16)              # (H, S, hd)
        kh = split_heads(qkv[:, D:2 * D]).astype(jnp.bfloat16)
        vh = split_heads(qkv[:, 2 * D:3 * D]).astype(jnp.bfloat16)

        s = jnp.einsum('hqd,hkd->hqk', qh, kh,
                       preferred_element_type=jnp.float32)              # (H, S, S) f32
        s = s - jnp.max(s, axis=-1, keepdims=True)
        p = jnp.exp(s)
        denom = jnp.sum(p, axis=-1, keepdims=True)                      # (H, S, 1)
        o = jnp.einsum('hqk,hkd->hqd', p.astype(jnp.bfloat16), vh,
                       preferred_element_type=jnp.float32)              # (H, S, hd) f32
        # Normalize the small (H,S,hd) output instead of the (H,S,S) probs; the
        # approximate reciprocal runs on the otherwise-idle EUP slot.
        o = o * pl.reciprocal(denom, approx=True)

        # Merge heads back with one relayout, then ONE full-K (S,D)@(D,D) projection.
        attn_cat = pltpu.einshape("hsd->shd", o).reshape(S, D)          # (S, D) f32
        attn = jnp.dot(attn_cat.astype(jnp.bfloat16), w_out[...],
                       preferred_element_type=jnp.float32) + b_out[...]
        x1 = x + attn                       # residual (dropout is identity in eval)

        # ---------------------- pre-norm + feed-forward -----------------------
        xn1 = layer_norm(x1, ln1_g, ln1_b)
        h1 = jnp.maximum(
            jnp.dot(xn1.astype(jnp.bfloat16), w1[...],
                    preferred_element_type=jnp.float32) + b1[...], 0.0)
        y = jnp.dot(h1.astype(jnp.bfloat16), w2[...],
                    preferred_element_type=jnp.float32) + b2[...]
        o_ref[...] = x1 + y

    return kernel


def prepare_kernel_params(params, D, H):
    """One-time host-side transform: fold the 1/sqrt(hd) q-scaling into the
    in-projection and cast matmul weights to bf16 (accumulation stays f32)."""
    hd = D // H
    scaling = float(hd) ** -0.5
    scale_row = jnp.concatenate(
        [jnp.full((1, D), scaling, jnp.float32),
         jnp.ones((1, 2 * D), jnp.float32)], axis=-1)                   # (1, 3D)
    return dict(
        ln0_g=params["ln0_g"], ln0_b=params["ln0_b"],
        w_in=(params["w_in"] * scale_row).astype(jnp.bfloat16),         # (D, 3D) bf16
        b_in=params["b_in"] * scale_row,                                # f32 (post-acc add)
        w_out=params["w_out"].astype(jnp.bfloat16),
        b_out=params["b_out"],
        ln1_g=params["ln1_g"], ln1_b=params["ln1_b"],
        w1=params["w1"].astype(jnp.bfloat16), b1=params["b1"],
        w2=params["w2"].astype(jnp.bfloat16), b2=params["b2"],
    )


def _pick_vmem_limit_bytes():
    """~75% of physical VMEM, capped at 100 MiB: ~96-100 MiB on v5e/v6e (128 MiB),
    ~48 MiB on v7x (64 MiB)."""
    try:
        cap = pltpu.get_tpu_info().vmem_capacity_bytes
    except Exception:
        cap = 64 * 1024 * 1024
    return min(int(cap) * 3 // 4, 100 * 1024 * 1024)


def transformer_encoder_layer(x_sbd, params, num_heads):
    S, B, D = x_sbd.shape
    # Packed per-batch (S, D) slab layout (best for small D); see TODO(synk) at the
    # top of the file for the large-D / large-S direct-indexing + flash-tiled variants.
    x_bsd = jnp.transpose(x_sbd, (1, 0, 2)).astype(jnp.float32)

    kp = prepare_kernel_params(params, D, num_heads)
    param_list = [kp["ln0_g"], kp["ln0_b"], kp["w_in"], kp["b_in"],
                  kp["w_out"], kp["b_out"], kp["ln1_g"], kp["ln1_b"],
                  kp["w1"], kp["b1"], kp["w2"], kp["b2"]]

    kernel = make_encoder_layer_kernel(S, D, num_heads)

    out_bsd = pl.pallas_call(
        kernel,
        out_shape=jax.ShapeDtypeStruct((B, S, D), jnp.float32),
        grid_spec=pltpu.PrefetchScalarGridSpec(
            num_scalar_prefetch=0,
            grid=(B,),
            in_specs=[pl.BlockSpec((None, S, D), lambda b: (b, 0, 0))]
                     # Grid-invariant weights (constant index map -> fetched once).
                     + [pl.BlockSpec(p.shape, lambda b: (0, 0)) for p in param_list],
            out_specs=pl.BlockSpec((None, S, D), lambda b: (b, 0, 0)),
        ),
        compiler_params=pltpu.CompilerParams(
            dimension_semantics=("parallel",),          # batch -> both TCs on v7x
            vmem_limit_bytes=_pick_vmem_limit_bytes()),
    )(x_bsd, *param_list)

    return jnp.transpose(out_bsd, (1, 0, 2))


def init_params(key, D):
    """Deterministic init mirroring the PyTorch module's __init__ (f32, canonical)."""
    def xavier_uniform(k, out_f, in_f):
        a = math.sqrt(6.0 / (in_f + out_f))
        return jax.random.uniform(k, (out_f, in_f), jnp.float32, -a, a)

    k_in, k_out, k_fc1, k_fc2 = jax.random.split(key, 4)

    in_proj_w = xavier_uniform(k_in, 3 * D, D)        # (3D, D)
    out_proj_w = xavier_uniform(k_out, D, D)          # (D, D)
    fc1_w = xavier_uniform(k_fc1, 2 * D, D)           # (2D, D)
    fc2_w = xavier_uniform(k_fc2, D, 2 * D)           # (D, 2D)

    params = {
        "ln0_g": jnp.ones((1, D), jnp.float32),
        "ln0_b": jnp.zeros((1, D), jnp.float32),
        "w_in": in_proj_w.T,                          # (D, 3D)   x @ W.T -> x @ w_in
        "b_in": jnp.zeros((1, 3 * D), jnp.float32),
        "w_out": out_proj_w.T,                        # (D, D)
        "b_out": jnp.zeros((1, D), jnp.float32),
        "ln1_g": jnp.ones((1, D), jnp.float32),
        "ln1_b": jnp.zeros((1, D), jnp.float32),
        "w1": fc1_w.T,                                # (D, 2D)
        "b1": jnp.zeros((1, 2 * D), jnp.float32),
        "w2": fc2_w.T,                                # (2D, D)
        "b2": jnp.zeros((1, D), jnp.float32),
    }
    return params


def reference_forward(x_sbd, params, H):
    """Pure-JAX f32 reference of the PyTorch forward (eval mode)."""
    S, B, D = x_sbd.shape
    hd = D // H
    x = x_sbd.astype(jnp.float32)

    def ln(v, g, b):
        mu = v.mean(-1, keepdims=True)
        var = ((v - mu) ** 2).mean(-1, keepdims=True)
        return (v - mu) / jnp.sqrt(var + 1e-5) * g + b

    xn = ln(x, params["ln0_g"], params["ln0_b"])
    qkv = xn @ params["w_in"] + params["b_in"]
    q = (qkv[..., :D] * hd ** -0.5).reshape(S, B, H, hd)
    k = qkv[..., D:2 * D].reshape(S, B, H, hd)
    v = qkv[..., 2 * D:].reshape(S, B, H, hd)
    s = jnp.einsum("sbhd,tbhd->bhst", q, k)
    p = jax.nn.softmax(s, axis=-1)
    o = jnp.einsum("bhst,tbhd->sbhd", p, v).reshape(S, B, D)
    attn = o @ params["w_out"] + params["b_out"]
    x1 = x + attn
    xn1 = ln(x1, params["ln1_g"], params["ln1_b"])
    h1 = jax.nn.relu(xn1 @ params["w1"] + params["b1"])
    y = h1 @ params["w2"] + params["b2"]
    return x1 + y


if __name__ == "__main__":
    SEQ, BATCH, EMBED, HEADS = 8, 2, 32, 4

    key = jax.random.PRNGKey(0)
    k_x, k_p = jax.random.split(key)
    x = jax.random.normal(k_x, (SEQ, BATCH, EMBED), jnp.float32)
    params = init_params(k_p, EMBED)

    out = transformer_encoder_layer(x, params, HEADS)
    out = jax.block_until_ready(out)

    ref = reference_forward(x, params, HEADS)
    assert out.shape == (SEQ, BATCH, EMBED)
    # bf16 matmul weights + approx reciprocal on the softmax denominator introduce
    # small deviations from the pure-f32 reference; 2e-2 tolerance covers eval use.
    assert bool(jnp.allclose(out, ref, atol=2e-2, rtol=2e-2))

    print("KERNEL_OK")
</pallas_src>

<mosaic_0001>
module attributes {stable_mosaic.version = 11 : i64} {
  func.func @kernel(%arg0: i32, %arg1: memref<1x8x32xf32, #tpu.memory_space<vmem>>, %arg2: memref<1x32xf32, #tpu.memory_space<vmem>>, %arg3: memref<1x32xf32, #tpu.memory_space<vmem>>, %arg4: memref<32x96xbf16, #tpu.memory_space<vmem>>, %arg5: memref<1x96xf32, #tpu.memory_space<vmem>>, %arg6: memref<32x32xbf16, #tpu.memory_space<vmem>>, %arg7: memref<1x32xf32, #tpu.memory_space<vmem>>, %arg8: memref<1x32xf32, #tpu.memory_space<vmem>>, %arg9: memref<1x32xf32, #tpu.memory_space<vmem>>, %arg10: memref<32x64xbf16, #tpu.memory_space<vmem>>, %arg11: memref<1x64xf32, #tpu.memory_space<vmem>>, %arg12: memref<64x32xbf16, #tpu.memory_space<vmem>>, %arg13: memref<1x32xf32, #tpu.memory_space<vmem>>, %arg14: memref<1x8x32xf32, #tpu.memory_space<vmem>>) attributes {dimension_semantics = [#tpu.dimension_semantics<parallel>], iteration_bounds = array<i64: 2>, scalar_prefetch = 0 : i64, scratch_operands = 0 : i64, tpu.core_type = #tpu.core_type<tc>, window_params = [{transform_indices = @transform_0, window_bounds = array<i64: 1, 8, 32>}, {pipeline_mode = #tpu.pipeline_mode<synchronous>, transform_indices = @transform_1, window_bounds = array<i64: 1, 32>}, {pipeline_mode = #tpu.pipeline_mode<synchronous>, transform_indices = @transform_2, window_bounds = array<i64: 1, 32>}, {pipeline_mode = #tpu.pipeline_mode<synchronous>, transform_indices = @transform_3, window_bounds = array<i64: 32, 96>}, {pipeline_mode = #tpu.pipeline_mode<synchronous>, transform_indices = @transform_4, window_bounds = array<i64: 1, 96>}, {pipeline_mode = #tpu.pipeline_mode<synchronous>, transform_indices = @transform_5, window_bounds = array<i64: 32, 32>}, {pipeline_mode = #tpu.pipeline_mode<synchronous>, transform_indices = @transform_6, window_bounds = array<i64: 1, 32>}, {pipeline_mode = #tpu.pipeline_mode<synchronous>, transform_indices = @transform_7, window_bounds = array<i64: 1, 32>}, {pipeline_mode = #tpu.pipeline_mode<synchronous>, transform_indices = @transform_8, window_bounds = array<i64: 1, 32>}, {pipeline_mode = #tpu.pipeline_mode<synchronous>, transform_indices = @transform_9, window_bounds = array<i64: 32, 64>}, {pipeline_mode = #tpu.pipeline_mode<synchronous>, transform_indices = @transform_10, window_bounds = array<i64: 1, 64>}, {pipeline_mode = #tpu.pipeline_mode<synchronous>, transform_indices = @transform_11, window_bounds = array<i64: 64, 32>}, {pipeline_mode = #tpu.pipeline_mode<synchronous>, transform_indices = @transform_12, window_bounds = array<i64: 1, 32>}, {transform_indices = @transform_13, window_bounds = array<i64: 1, 8, 32>}]} {
    %c0 = arith.constant 0 : index
    %c0_0 = arith.constant 0 : index
    %c0_1 = arith.constant 0 : index
    %0 = vector.load %arg1[%c0, %c0_0, %c0_1] : memref<1x8x32xf32, #tpu.memory_space<vmem>>, vector<1x8x32xf32>
    %1 = vector.shape_cast %0 : vector<1x8x32xf32> to vector<8x32xf32>
    %cst = arith.constant dense<0.000000e+00> : vector<8xf32>
    %2 = vector.multi_reduction <add>, %1, %cst [1] : vector<8x32xf32> to vector<8xf32>
    %3 = vector.shape_cast %2 : vector<8xf32> to vector<8x1xf32>
    %cst_2 = arith.constant 3.200000e+01 : f32
    %4 = vector.broadcast %cst_2 : f32 to vector<8x1xf32>
    %5 = arith.divf %3, %4 : vector<8x1xf32>
    %6 = vector.broadcast %5 : vector<8x1xf32> to vector<8x32xf32>
    %7 = arith.subf %1, %6 : vector<8x32xf32>
    %8 = arith.mulf %7, %7 : vector<8x32xf32>
    %cst_3 = arith.constant dense<0.000000e+00> : vector<8xf32>
    %9 = vector.multi_reduction <add>, %8, %cst_3 [1] : vector<8x32xf32> to vector<8xf32>
    %10 = vector.shape_cast %9 : vector<8xf32> to vector<8x1xf32>
    %cst_4 = arith.constant 3.200000e+01 : f32
    %11 = vector.broadcast %cst_4 : f32 to vector<8x1xf32>
    %12 = arith.divf %10, %11 : vector<8x1xf32>
    %13 = vector.broadcast %5 : vector<8x1xf32> to vector<8x32xf32>
    %14 = arith.subf %1, %13 : vector<8x32xf32>
    %cst_5 = arith.constant 9.99999974E-6 : f32
    %15 = vector.broadcast %cst_5 : f32 to vector<8x1xf32>
    %16 = arith.addf %12, %15 : vector<8x1xf32>
    %17 = math.rsqrt %16 : vector<8x1xf32>
    %18 = vector.broadcast %17 : vector<8x1xf32> to vector<8x32xf32>
    %19 = arith.mulf %14, %18 : vector<8x32xf32>
    %c0_6 = arith.constant 0 : index
    %c0_7 = arith.constant 0 : index
    %20 = vector.load %arg2[%c0_6, %c0_7] : memref<1x32xf32, #tpu.memory_space<vmem>>, vector<1x32xf32>
    %21 = vector.broadcast %20 : vector<1x32xf32> to vector<8x32xf32>
    %22 = arith.mulf %19, %21 : vector<8x32xf32>
    %c0_8 = arith.constant 0 : index
    %c0_9 = arith.constant 0 : index
    %23 = vector.load %arg3[%c0_8, %c0_9] : memref<1x32xf32, #tpu.memory_space<vmem>>, vector<1x32xf32>
    %24 = vector.broadcast %23 : vector<1x32xf32> to vector<8x32xf32>
    %25 = arith.addf %22, %24 : vector<8x32xf32>
    %26 = arith.truncf %25 : vector<8x32xf32> to vector<8x32xbf16>
    %c0_10 = arith.constant 0 : index
    %c0_11 = arith.constant 0 : index
    %27 = vector.load %arg4[%c0_10, %c0_11] : memref<32x96xbf16, #tpu.memory_space<vmem>>, vector<32x96xbf16>
    %cst_12 = arith.constant dense<0.000000e+00> : vector<8x96xf32>
    %28 = tpu.matmul %26, %27, %cst_12 {dimension_numbers = #tpu.dot_dimension_numbers<[1], [0], [0], [1], [0, 0, 1, 1], [], []>} : vector<8x32xbf16>, vector<32x96xbf16>, vector<8x96xf32> -> vector<8x96xf32>
    %c0_13 = arith.constant 0 : index
    %c0_14 = arith.constant 0 : index
    %29 = vector.load %arg5[%c0_13, %c0_14] : memref<1x96xf32, #tpu.memory_space<vmem>>, vector<1x96xf32>
    %30 = vector.broadcast %29 : vector<1x96xf32> to vector<8x96xf32>
    %31 = arith.addf %28, %30 : vector<8x96xf32>
    %32 = vector.extract_strided_slice %31 {offsets = [0, 0], sizes = [8, 32], strides = [1, 1]} : vector<8x96xf32> to vector<8x32xf32>
    %33 = vector.shape_cast %32 : vector<8x32xf32> to vector<8x4x8xf32>
    %34 = tpu.transpose %33, [1, 0, 2] : vector<8x4x8xf32> -> vector<4x8x8xf32>
    %35 = arith.truncf %34 : vector<4x8x8xf32> to vector<4x8x8xbf16>
    %36 = vector.extract_strided_slice %31 {offsets = [0, 32], sizes = [8, 32], strides = [1, 1]} : vector<8x96xf32> to vector<8x32xf32>
    %37 = vector.shape_cast %36 : vector<8x32xf32> to vector<8x4x8xf32>
    %38 = tpu.transpose %37, [1, 0, 2] : vector<8x4x8xf32> -> vector<4x8x8xf32>
    %39 = arith.truncf %38 : vector<4x8x8xf32> to vector<4x8x8xbf16>
    %40 = vector.extract_strided_slice %31 {offsets = [0, 64], sizes = [8, 32], strides = [1, 1]} : vector<8x96xf32> to vector<8x32xf32>
    %41 = vector.shape_cast %40 : vector<8x32xf32> to vector<8x4x8xf32>
    %42 = tpu.transpose %41, [1, 0, 2] : vector<8x4x8xf32> -> vector<4x8x8xf32>
    %43 = arith.truncf %42 : vector<4x8x8xf32> to vector<4x8x8xbf16>
    "tpu.trace_start"() <{level = 10 : i32, message = "hqd,hkd->hqk"}> : () -> ()
    %cst_15 = arith.constant dense<0.000000e+00> : vector<4x8x8xf32>
    %44 = tpu.matmul %35, %39, %cst_15 {dimension_numbers = #tpu.dot_dimension_numbers<[2], [2], [1], [1], [0, 0, 0, 1, 1, 1], [0], [0]>} : vector<4x8x8xbf16>, vector<4x8x8xbf16>, vector<4x8x8xf32> -> vector<4x8x8xf32>
    "tpu.trace_stop"() : () -> ()
    %cst_16 = arith.constant dense<0xFF800000> : vector<4x8xf32>
    %45 = vector.multi_reduction <maximumf>, %44, %cst_16 [2] : vector<4x8x8xf32> to vector<4x8xf32>
    %46 = vector.shape_cast %45 : vector<4x8xf32> to vector<4x8x1xf32>
    %47 = vector.broadcast %46 : vector<4x8x1xf32> to vector<4x8x8xf32>
    %48 = arith.subf %44, %47 : vector<4x8x8xf32>
    %49 = math.exp %48 : vector<4x8x8xf32>
    %cst_17 = arith.constant dense<0.000000e+00> : vector<4x8xf32>
    %50 = vector.multi_reduction <add>, %49, %cst_17 [2] : vector<4x8x8xf32> to vector<4x8xf32>
    %51 = vector.shape_cast %50 : vector<4x8xf32> to vector<4x8x1xf32>
    %52 = arith.truncf %49 : vector<4x8x8xf32> to vector<4x8x8xbf16>
    "tpu.trace_start"() <{level = 10 : i32, message = "hqk,hkd->hqd"}> : () -> ()
    %cst_18 = arith.constant dense<0.000000e+00> : vector<4x8x8xf32>
    %53 = tpu.matmul %52, %43, %cst_18 {dimension_numbers = #tpu.dot_dimension_numbers<[2], [1], [1], [2], [0, 0, 0, 1, 1, 2], [0], [0]>} : vector<4x8x8xbf16>, vector<4x8x8xbf16>, vector<4x8x8xf32> -> vector<4x8x8xf32>
    "tpu.trace_stop"() : () -> ()
    %54 = tpu.reciprocal %51 {approx = true} : vector<4x8x1xf32> -> vector<4x8x1xf32>
    %55 = vector.broadcast %54 : vector<4x8x1xf32> to vector<4x8x8xf32>
    %56 = arith.mulf %53, %55 : vector<4x8x8xf32>
    %57 = tpu.transpose %56, [1, 0, 2] : vector<4x8x8xf32> -> vector<8x4x8xf32>
    %58 = vector.shape_cast %57 : vector<8x4x8xf32> to vector<8x32xf32>
    %59 = arith.truncf %58 : vector<8x32xf32> to vector<8x32xbf16>
    %c0_19 = arith.constant 0 : index
    %c0_20 = arith.constant 0 : index
    %60 = vector.load %arg6[%c0_19, %c0_20] : memref<32x32xbf16, #tpu.memory_space<vmem>>, vector<32x32xbf16>
    %cst_21 = arith.constant dense<0.000000e+00> : vector<8x32xf32>
    %61 = tpu.matmul %59, %60, %cst_21 {dimension_numbers = #tpu.dot_dimension_numbers<[1], [0], [0], [1], [0, 0, 1, 1], [], []>} : vector<8x32xbf16>, vector<32x32xbf16>, vector<8x32xf32> -> vector<8x32xf32>
    %c0_22 = arith.constant 0 : index
    %c0_23 = arith.constant 0 : index
    %62 = vector.load %arg7[%c0_22, %c0_23] : memref<1x32xf32, #tpu.memory_space<vmem>>, vector<1x32xf32>
    %63 = vector.broadcast %62 : vector<1x32xf32> to vector<8x32xf32>
    %64 = arith.addf %61, %63 : vector<8x32xf32>
    %65 = arith.addf %1, %64 : vector<8x32xf32>
    %cst_24 = arith.constant dense<0.000000e+00> : vector<8xf32>
    %66 = vector.multi_reduction <add>, %65, %cst_24 [1] : vector<8x32xf32> to vector<8xf32>
    %67 = vector.shape_cast %66 : vector<8xf32> to vector<8x1xf32>
    %cst_25 = arith.constant 3.200000e+01 : f32
    %68 = vector.broadcast %cst_25 : f32 to vector<8x1xf32>
    %69 = arith.divf %67, %68 : vector<8x1xf32>
    %70 = vector.broadcast %69 : vector<8x1xf32> to vector<8x32xf32>
    %71 = arith.subf %65, %70 : vector<8x32xf32>
    %72 = arith.mulf %71, %71 : vector<8x32xf32>
    %cst_26 = arith.constant dense<0.000000e+00> : vector<8xf32>
    %73 = vector.multi_reduction <add>, %72, %cst_26 [1] : vector<8x32xf32> to vector<8xf32>
    %74 = vector.shape_cast %73 : vector<8xf32> to vector<8x1xf32>
    %cst_27 = arith.constant 3.200000e+01 : f32
    %75 = vector.broadcast %cst_27 : f32 to vector<8x1xf32>
    %76 = arith.divf %74, %75 : vector<8x1xf32>
    %77 = vector.broadcast %69 : vector<8x1xf32> to vector<8x32xf32>
    %78 = arith.subf %65, %77 : vector<8x32xf32>
    %cst_28 = arith.constant 9.99999974E-6 : f32
    %79 = vector.broadcast %cst_28 : f32 to vector<8x1xf32>
    %80 = arith.addf %76, %79 : vector<8x1xf32>
    %81 = math.rsqrt %80 : vector<8x1xf32>
    %82 = vector.broadcast %81 : vector<8x1xf32> to vector<8x32xf32>
    %83 = arith.mulf %78, %82 : vector<8x32xf32>
    %c0_29 = arith.constant 0 : index
    %c0_30 = arith.constant 0 : index
    %84 = vector.load %arg8[%c0_29, %c0_30] : memref<1x32xf32, #tpu.memory_space<vmem>>, vector<1x32xf32>
    %85 = vector.broadcast %84 : vector<1x32xf32> to vector<8x32xf32>
    %86 = arith.mulf %83, %85 : vector<8x32xf32>
    %c0_31 = arith.constant 0 : index
    %c0_32 = arith.constant 0 : index
    %87 = vector.load %arg9[%c0_31, %c0_32] : memref<1x32xf32, #tpu.memory_space<vmem>>, vector<1x32xf32>
    %88 = vector.broadcast %87 : vector<1x32xf32> to vector<8x32xf32>
    %89 = arith.addf %86, %88 : vector<8x32xf32>
    %90 = arith.truncf %89 : vector<8x32xf32> to vector<8x32xbf16>
    %c0_33 = arith.constant 0 : index
    %c0_34 = arith.constant 0 : index
    %91 = vector.load %arg10[%c0_33, %c0_34] : memref<32x64xbf16, #tpu.memory_space<vmem>>, vector<32x64xbf16>
    %cst_35 = arith.constant dense<0.000000e+00> : vector<8x64xf32>
    %92 = tpu.matmul %90, %91, %cst_35 {dimension_numbers = #tpu.dot_dimension_numbers<[1], [0], [0], [1], [0, 0, 1, 1], [], []>} : vector<8x32xbf16>, vector<32x64xbf16>, vector<8x64xf32> -> vector<8x64xf32>
    %c0_36 = arith.constant 0 : index
    %c0_37 = arith.constant 0 : index
    %93 = vector.load %arg11[%c0_36, %c0_37] : memref<1x64xf32, #tpu.memory_space<vmem>>, vector<1x64xf32>
    %94 = vector.broadcast %93 : vector<1x64xf32> to vector<8x64xf32>
    %95 = arith.addf %92, %94 : vector<8x64xf32>
    %cst_38 = arith.constant 0.000000e+00 : f32
    %96 = vector.broadcast %cst_38 : f32 to vector<8x64xf32>
    %97 = arith.maximumf %95, %96 : vector<8x64xf32>
    %98 = arith.truncf %97 : vector<8x64xf32> to vector<8x64xbf16>
    %c0_39 = arith.constant 0 : index
    %c0_40 = arith.constant 0 : index
    %99 = vector.load %arg12[%c0_39, %c0_40] : memref<64x32xbf16, #tpu.memory_space<vmem>>, vector<64x32xbf16>
    %cst_41 = arith.constant dense<0.000000e+00> : vector<8x32xf32>
    %100 = tpu.matmul %98, %99, %cst_41 {dimension_numbers = #tpu.dot_dimension_numbers<[1], [0], [0], [1], [0, 0, 1, 1], [], []>} : vector<8x64xbf16>, vector<64x32xbf16>, vector<8x32xf32> -> vector<8x32xf32>
    %c0_42 = arith.constant 0 : index
    %c0_43 = arith.constant 0 : index
    %101 = vector.load %arg13[%c0_42, %c0_43] : memref<1x32xf32, #tpu.memory_space<vmem>>, vector<1x32xf32>
    %102 = vector.broadcast %101 : vector<1x32xf32> to vector<8x32xf32>
    %103 = arith.addf %100, %102 : vector<8x32xf32>
    %104 = arith.addf %65, %103 : vector<8x32xf32>
    %c0_44 = arith.constant 0 : index
    %c0_45 = arith.constant 0 : index
    %c0_46 = arith.constant 0 : index
    %105 = vector.load %arg14[%c0_44, %c0_45, %c0_46] : memref<1x8x32xf32, #tpu.memory_space<vmem>>, vector<1x8x32xf32>
    %106 = vector.shape_cast %105 : vector<1x8x32xf32> to vector<8x32xf32>
    %107 = vector.shape_cast %104 : vector<8x32xf32> to vector<1x8x32xf32>
    tpu.vector_store %arg14[%c0_44, %c0_45, %c0_46], %107 {strides = array<i32>} : memref<1x8x32xf32, #tpu.memory_space<vmem>>, vector<1x8x32xf32>,
    return
  }
  func.func @transform_0(%arg0: i32) -> (i32, i32, i32) {
    %c0_i32 = arith.constant 0 : i32
    %c0_i32_0 = arith.constant 0 : i32
    %c0_i32_1 = arith.constant 0 : i32
    return %arg0, %c0_i32, %c0_i32_0 : i32, i32, i32
  }
  func.func @transform_1(%arg0: i32) -> (i32, i32) {
    %c0_i32 = arith.constant 0 : i32
    %c0_i32_0 = arith.constant 0 : i32
    %c0_i32_1 = arith.constant 0 : i32
    return %c0_i32, %c0_i32_0 : i32, i32
  }
  func.func @transform_2(%arg0: i32) -> (i32, i32) {
    %c0_i32 = arith.constant 0 : i32
    %c0_i32_0 = arith.constant 0 : i32
    %c0_i32_1 = arith.constant 0 : i32
    return %c0_i32, %c0_i32_0 : i32, i32
  }
  func.func @transform_3(%arg0: i32) -> (i32, i32) {
    %c0_i32 = arith.constant 0 : i32
    %c0_i32_0 = arith.constant 0 : i32
    %c0_i32_1 = arith.constant 0 : i32
    return %c0_i32, %c0_i32_0 : i32, i32
  }
  func.func @transform_4(%arg0: i32) -> (i32, i32) {
    %c0_i32 = arith.constant 0 : i32
    %c0_i32_0 = arith.constant 0 : i32
    %c0_i32_1 = arith.constant 0 : i32
    return %c0_i32, %c0_i32_0 : i32, i32
  }
  func.func @transform_5(%arg0: i32) -> (i32, i32) {
    %c0_i32 = arith.constant 0 : i32
    %c0_i32_0 = arith.constant 0 : i32
    %c0_i32_1 = arith.constant 0 : i32
    return %c0_i32, %c0_i32_0 : i32, i32
  }
  func.func @transform_6(%arg0: i32) -> (i32, i32) {
    %c0_i32 = arith.constant 0 : i32
    %c0_i32_0 = arith.constant 0 : i32
    %c0_i32_1 = arith.constant 0 : i32
    return %c0_i32, %c0_i32_0 : i32, i32
  }
  func.func @transform_7(%arg0: i32) -> (i32, i32) {
    %c0_i32 = arith.constant 0 : i32
    %c0_i32_0 = arith.constant 0 : i32
    %c0_i32_1 = arith.constant 0 : i32
    return %c0_i32, %c0_i32_0 : i32, i32
  }
  func.func @transform_8(%arg0: i32) -> (i32, i32) {
    %c0_i32 = arith.constant 0 : i32
    %c0_i32_0 = arith.constant 0 : i32
    %c0_i32_1 = arith.constant 0 : i32
    return %c0_i32, %c0_i32_0 : i32, i32
  }
  func.func @transform_9(%arg0: i32) -> (i32, i32) {
    %c0_i32 = arith.constant 0 : i32
    %c0_i32_0 = arith.constant 0 : i32
    %c0_i32_1 = arith.constant 0 : i32
    return %c0_i32, %c0_i32_0 : i32, i32
  }
  func.func @transform_10(%arg0: i32) -> (i32, i32) {
    %c0_i32 = arith.constant 0 : i32
    %c0_i32_0 = arith.constant 0 : i32
    %c0_i32_1 = arith.constant 0 : i32
    return %c0_i32, %c0_i32_0 : i32, i32
  }
  func.func @transform_11(%arg0: i32) -> (i32, i32) {
    %c0_i32 = arith.constant 0 : i32
    %c0_i32_0 = arith.constant 0 : i32
    %c0_i32_1 = arith.constant 0 : i32
    return %c0_i32, %c0_i32_0 : i32, i32
  }
  func.func @transform_12(%arg0: i32) -> (i32, i32) {
    %c0_i32 = arith.constant 0 : i32
    %c0_i32_0 = arith.constant 0 : i32
    %c0_i32_1 = arith.constant 0 : i32
    return %c0_i32, %c0_i32_0 : i32, i32
  }
  func.func @transform_13(%arg0: i32) -> (i32, i32, i32) {
    %c0_i32 = arith.constant 0 : i32
    %c0_i32_0 = arith.constant 0 : i32
    %c0_i32_1 = arith.constant 0 : i32
    return %arg0, %c0_i32, %c0_i32_0 : i32, i32, i32
  }
}

</mosaic_0001>

<llo_original>
// kernel: tpu_custom_call.1
$region0: #{tpu_custom_call.1}
  #allocation0 [shape = 'u32[]', space=smem, size = 0x4, offset = 0x4, fixed_abs, tag = 'smem constant byte address 0x4 - core index']
  #allocation1 [shape = 'u32[144,128]{1,0:T(1,128)}', space=vmem, size = 0x12000, scoped, tag = 'internal scratch']
  %s0 = inlined_call_operand.vmem [shape: f32[2,8,32], index: 0, kind: input, shape index: {}]
  %s1 = inlined_call_operand.vmem [shape: f32[1,32], index: 1, kind: input, shape index: {}]
  %s2 = inlined_call_operand.vmem [shape: f32[1,32], index: 2, kind: input, shape index: {}]
  %s3 = inlined_call_operand.vmem [shape: bf16[32,96], index: 3, kind: input, shape index: {}]
  %s4 = inlined_call_operand.hbm [shape: f32[1,96], index: 4, kind: input, shape index: {}]
  %s5 = inlined_call_operand.vmem [shape: bf16[32,32], index: 5, kind: input, shape index: {}]
  %s6 = inlined_call_operand.hbm [shape: f32[1,32], index: 6, kind: input, shape index: {}]
  %s7 = inlined_call_operand.hbm [shape: f32[1,32], index: 7, kind: input, shape index: {}]
  %s8 = inlined_call_operand.hbm [shape: f32[1,32], index: 8, kind: input, shape index: {}]
  %s9 = inlined_call_operand.vmem [shape: bf16[32,64], index: 9, kind: input, shape index: {}]
  %s10 = inlined_call_operand.vmem [shape: f32[1,64], index: 10, kind: input, shape index: {}]
  %s11 = inlined_call_operand.vmem [shape: bf16[64,32], index: 11, kind: input, shape index: {}]
  %s12 = inlined_call_operand.vmem [shape: f32[1,32], index: 12, kind: input, shape index: {}]
  %s13 = inlined_call_operand.hbm [shape: f32[2,8,32], index: 13, kind: output, shape index: {}]
  %s14 = sld [smem:[#allocation0]]
  $region101: #{tpu_custom_call.1} parent=0
    _
  %s16 = ssub.s32 1, %s14
  %s17 = scalar_select 0, %s16, %s14
  $region1: #{tpu_custom_call.1} parent=0
    #allocation2 [shape = 'u8[512]{0}', space=vmem, size = 0x400, scoped, tag = 'input window, operand 4, single buffered']
    #allocation3 [shape = 's32[2]{0}', space=sflag, size = 0x8, scoped, tag = 'scoped memory for tpu_custom_call.1']
    #allocation4 [shape = 's32[2]{0}', space=sflag, size = 0x8, scoped, tag = 'scoped memory for tpu_custom_call.1']
    #allocation5 [shape = 'u8[512]{0}', space=vmem, size = 0x400, scoped, tag = 'input window, operand 6, single buffered']
    #allocation6 [shape = 's32[1]{0}', space=sflag, size = 0x4, scoped, tag = 'scoped memory for tpu_custom_call.1']
    #allocation7 [shape = 'u8[512]{0}', space=vmem, size = 0x400, scoped, tag = 'input window, operand 7, single buffered']
    #allocation8 [shape = 'u8[512]{0}', space=vmem, size = 0x400, scoped, tag = 'input window, operand 8, single buffered']
    #allocation9 [shape = 's32[1]{0}', space=sflag, size = 0x4, scoped, tag = 'scoped memory for tpu_custom_call.1']
    #allocation10 [shape = 'u8[8192]{0}', space=vmem, size = 0x2000, scoped, tag = 'output window, operand 0']
    %18 = vsyncpa [#allocation3], 0
    %19 = vsyncpa [#allocation6], 0
    %20 = vsyncpa [#allocation9], 0
    %21 = vsyncpa [#allocation4], 0
    %s22 = scalar_lea.sflag [#allocation4], 1
    %23 = vsyncpa %s22, 0
    loop: start=0, step=1, limit=4
    $region2: #{tpu_custom_call.1} parent=1 // loop_pre_header
      _
    $region3: #{tpu_custom_call.1} parent=1 // loop_header
      %s25 = sphi 0, %s29
      %p26 = scmp.ge.s32.totalorder %s25, 4
      %s35 = sphi 0, %s37
      %s38 = sphi 0, %s35
      %s39 = sphi 0, %s38
      %s55 = sphi 0, %s39
      %s59 = sphi 0, %s59
      %s61 = sphi 0, %s59
      %s62 = sphi 0, %s61
      %s76 = sphi 0, %s62
      %s80 = sphi 0, %s80
      %s82 = sphi 0, %s80
      %s83 = sphi 0, %s82
      %s97 = sphi 0, %s83
      %s101 = sphi 0, %s101
      %s103 = sphi 0, %s101
      %s104 = sphi 0, %s103
      %s118 = sphi 0, %s104
      %s122 = sphi 0, %s122
      %s124 = sphi 0, %s122
      %s125 = sphi 0, %s124
      %s139 = sphi 0, %s125
      %s143 = sphi 0, %s143
      %s145 = sphi 0, %s143
      %s146 = sphi 0, %s145
      %s160 = sphi 0, %s146
      %s164 = sphi 0, %s164
      %s166 = sphi 0, %s164
      %s167 = sphi 0, %s166
      %s181 = sphi 0, %s167
      %s185 = sphi 0, %s185
      %s187 = sphi 0, %s185
      %s188 = sphi 0, %s187
      %s202 = sphi 0, %s188
      %s206 = sphi 0, %s206
      %s208 = sphi 0, %s206
      %s209 = sphi 0, %s208
      %s223 = sphi 0, %s209
      %s227 = sphi 0, %s227
      %s229 = sphi 0, %s227
      %s230 = sphi 0, %s229
      %s244 = sphi 0, %s230
      %s248 = sphi 0, %s248
      %s250 = sphi 0, %s248
      %s251 = sphi 0, %s250
      %s265 = sphi 0, %s251
      %s269 = sphi 0, %s269
      %s271 = sphi 0, %s269
      %s272 = sphi 0, %s271
      %s286 = sphi 0, %s272
      %s290 = sphi 0, %s290
      %s292 = sphi 0, %s290
      %s293 = sphi 0, %s292
      %s307 = sphi 0, %s293
      %s313 = sphi 0, %s315
      %s316 = sphi 0, %s313
      %s317 = sphi 0, %s316
      %s333 = sphi 0, %s317
    $region4: #{tpu_custom_call.1} parent=1 // loop_header_branch
      %28 = sbr.rel (%p26) target = $region8
    $region5: #{tpu_custom_call.1} parent=1 // loop_body
      %s30 = ssub.s32 %s25, 1
      %s31 = ssub.s32 %s25, 2
      %s32 = sadd.s32 %s25, 1
      %s33 = ssub.s32 %s25, %s32
      %p34 = scmp.eq.s32.totalorder %s33, 0
      %s36 = sadd.s32 %s35, 1
      %s37 = scalar_select %p34, %s35, %s36
      %p40 = pneg %p34
      %p41 = scmp.eq.s32.totalorder %s25, 1
      %p42 = por %p40, %p41
      %p43 = scmp.ne.s32.totalorder %s35, %s38
      %p44 = scmp.eq.s32.totalorder %s25, 0
      %p45 = por %p43, %p44
      %p46 = scmp.ne.s32.totalorder %s35, %s38
      %p47 = scmp.eq.s32.totalorder %s30, 1
      %p48 = por %p46, %p47
      %p49 = scmp.ne.s32.totalorder %s38, %s39
      %p50 = scmp.eq.s32.totalorder %s30, 0
      %p51 = por %p49, %p50
      %p52 = scmp.ne.s32.totalorder %s38, %s39
      %p53 = scmp.eq.s32.totalorder %s31, 1
      %p54 = por %p52, %p53
      %p56 = scmp.ne.s32.totalorder %s39, %s55
      %p57 = scmp.eq.s32.totalorder %s31, 0
      %p58 = por %p56, %p57
      %s60 = sadd.s32 %s59, 1
      %p63 = scmp.eq.s32.totalorder %s25, 1
      %p64 = scmp.ne.s32.totalorder %s59, %s61
      %p65 = scmp.eq.s32.totalorder %s25, 0
      %p66 = por %p64, %p65
      %p67 = scmp.ne.s32.totalorder %s59, %s61
      %p68 = scmp.eq.s32.totalorder %s30, 1
      %p69 = por %p67, %p68
      %p70 = scmp.ne.s32.totalorder %s61, %s62
      %p71 = scmp.eq.s32.totalorder %s30, 0
      %p72 = por %p70, %p71
      %p73 = scmp.ne.s32.totalorder %s61, %s62
      %p74 = scmp.eq.s32.totalorder %s31, 1
      %p75 = por %p73, %p74
      %p77 = scmp.ne.s32.totalorder %s62, %s76
      %p78 = scmp.eq.s32.totalorder %s31, 0
      %p79 = por %p77, %p78
      %s81 = sadd.s32 %s80, 1
      %p84 = scmp.eq.s32.totalorder %s25, 1
      %p85 = scmp.ne.s32.totalorder %s80, %s82
      %p86 = scmp.eq.s32.totalorder %s25, 0
      %p87 = por %p85, %p86
      %p88 = scmp.ne.s32.totalorder %s80, %s82
      %p89 = scmp.eq.s32.totalorder %s30, 1
      %p90 = por %p88, %p89
      %p91 = scmp.ne.s32.totalorder %s82, %s83
      %p92 = scmp.eq.s32.totalorder %s30, 0
      %p93 = por %p91, %p92
      %p94 = scmp.ne.s32.totalorder %s82, %s83
      %p95 = scmp.eq.s32.totalorder %s31, 1
      %p96 = por %p94, %p95
      %p98 = scmp.ne.s32.totalorder %s83, %s97
      %p99 = scmp.eq.s32.totalorder %s31, 0
      %p100 = por %p98, %p99
      %s102 = sadd.s32 %s101, 1
      %p105 = scmp.eq.s32.totalorder %s25, 1
      %p106 = scmp.ne.s32.totalorder %s101, %s103
      %p107 = scmp.eq.s32.totalorder %s25, 0
      %p108 = por %p106, %p107
      %p109 = scmp.ne.s32.totalorder %s101, %s103
      %p110 = scmp.eq.s32.totalorder %s30, 1
      %p111 = por %p109, %p110
      %p112 = scmp.ne.s32.totalorder %s103, %s104
      %p113 = scmp.eq.s32.totalorder %s30, 0
      %p114 = por %p112, %p113
      %p115 = scmp.ne.s32.totalorder %s103, %s104
      %p116 = scmp.eq.s32.totalorder %s31, 1
      %p117 = por %p115, %p116
      %p119 = scmp.ne.s32.totalorder %s104, %s118
      %p120 = scmp.eq.s32.totalorder %s31, 0
      %p121 = por %p119, %p120
      %s123 = sadd.s32 %s122, 1
      %p126 = scmp.eq.s32.totalorder %s25, 1
      %p127 = scmp.ne.s32.totalorder %s122, %s124
      %p128 = scmp.eq.s32.totalorder %s25, 0
      %p129 = por %p127, %p128
      %p130 = scmp.ne.s32.totalorder %s122, %s124
      %p131 = scmp.eq.s32.totalorder %s30, 1
      %p132 = por %p130, %p131
      %p133 = scmp.ne.s32.totalorder %s124, %s125
      %p134 = scmp.eq.s32.totalorder %s30, 0
      %p135 = por %p133, %p134
      %p136 = scmp.ne.s32.totalorder %s124, %s125
      %p137 = scmp.eq.s32.totalorder %s31, 1
      %p138 = por %p136, %p137
      %p140 = scmp.ne.s32.totalorder %s125, %s139
      %p141 = scmp.eq.s32.totalorder %s31, 0
      %p142 = por %p140, %p141
      %s144 = sadd.s32 %s143, 1
      %p147 = scmp.eq.s32.totalorder %s25, 1
      %p148 = scmp.ne.s32.totalorder %s143, %s145
      %p149 = scmp.eq.s32.totalorder %s25, 0
      %p150 = por %p148, %p149
      %p151 = scmp.ne.s32.totalorder %s143, %s145
      %p152 = scmp.eq.s32.totalorder %s30, 1
      %p153 = por %p151, %p152
      %p154 = scmp.ne.s32.totalorder %s145, %s146
      %p155 = scmp.eq.s32.totalorder %s30, 0
      %p156 = por %p154, %p155
      %p157 = scmp.ne.s32.totalorder %s145, %s146
      %p158 = scmp.eq.s32.totalorder %s31, 1
      %p159 = por %p157, %p158
      %p161 = scmp.ne.s32.totalorder %s146, %s160
      %p162 = scmp.eq.s32.totalorder %s31, 0
      %p163 = por %p161, %p162
      %s165 = sadd.s32 %s164, 1
      %p168 = scmp.eq.s32.totalorder %s25, 1
      %p169 = scmp.ne.s32.totalorder %s164, %s166
      %p170 = scmp.eq.s32.totalorder %s25, 0
      %p171 = por %p169, %p170
      %p172 = scmp.ne.s32.totalorder %s164, %s166
      %p173 = scmp.eq.s32.totalorder %s30, 1
      %p174 = por %p172, %p173
      %p175 = scmp.ne.s32.totalorder %s166, %s167
      %p176 = scmp.eq.s32.totalorder %s30, 0
      %p177 = por %p175, %p176
      %p178 = scmp.ne.s32.totalorder %s166, %s167
      %p179 = scmp.eq.s32.totalorder %s31, 1
      %p180 = por %p178, %p179
      %p182 = scmp.ne.s32.totalorder %s167, %s181
      %p183 = scmp.eq.s32.totalorder %s31, 0
      %p184 = por %p182, %p183
      %s186 = sadd.s32 %s185, 1
      %p189 = scmp.eq.s32.totalorder %s25, 1
      %p190 = scmp.ne.s32.totalorder %s185, %s187
      %p191 = scmp.eq.s32.totalorder %s25, 0
      %p192 = por %p190, %p191
      %p193 = scmp.ne.s32.totalorder %s185, %s187
      %p194 = scmp.eq.s32.totalorder %s30, 1
      %p195 = por %p193, %p194
      %p196 = scmp.ne.s32.totalorder %s187, %s188
      %p197 = scmp.eq.s32.totalorder %s30, 0
      %p198 = por %p196, %p197
      %p199 = scmp.ne.s32.totalorder %s187, %s188
      %p200 = scmp.eq.s32.totalorder %s31, 1
      %p201 = por %p199, %p200
      %p203 = scmp.ne.s32.totalorder %s188, %s202
      %p204 = scmp.eq.s32.totalorder %s31, 0
      %p205 = por %p203, %p204
      %s207 = sadd.s32 %s206, 1
      %p210 = scmp.eq.s32.totalorder %s25, 1
      %p211 = scmp.ne.s32.totalorder %s206, %s208
      %p212 = scmp.eq.s32.totalorder %s25, 0
      %p213 = por %p211, %p212
      %p214 = scmp.ne.s32.totalorder %s206, %s208
      %p215 = scmp.eq.s32.totalorder %s30, 1
      %p216 = por %p214, %p215
      %p217 = scmp.ne.s32.totalorder %s208, %s209
      %p218 = scmp.eq.s32.totalorder %s30, 0
      %p219 = por %p217, %p218
      %p220 = scmp.ne.s32.totalorder %s208, %s209
      %p221 = scmp.eq.s32.totalorder %s31, 1
      %p222 = por %p220, %p221
      %p224 = scmp.ne.s32.totalorder %s209, %s223
      %p225 = scmp.eq.s32.totalorder %s31, 0
      %p226 = por %p224, %p225
      %s228 = sadd.s32 %s227, 1
      %p231 = scmp.eq.s32.totalorder %s25, 1
      %p232 = scmp.ne.s32.totalorder %s227, %s229
      %p233 = scmp.eq.s32.totalorder %s25, 0
      %p234 = por %p232, %p233
      %p235 = scmp.ne.s32.totalorder %s227, %s229
      %p236 = scmp.eq.s32.totalorder %s30, 1
      %p237 = por %p235, %p236
      %p238 = scmp.ne.s32.totalorder %s229, %s230
      %p239 = scmp.eq.s32.totalorder %s30, 0
      %p240 = por %p238, %p239
      %p241 = scmp.ne.s32.totalorder %s229, %s230
      %p242 = scmp.eq.s32.totalorder %s31, 1
      %p243 = por %p241, %p242
      %p245 = scmp.ne.s32.totalorder %s230, %s244
      %p246 = scmp.eq.s32.totalorder %s31, 0
      %p247 = por %p245, %p246
      %s249 = sadd.s32 %s248, 1
      %p252 = scmp.eq.s32.totalorder %s25, 1
      %p253 = scmp.ne.s32.totalorder %s248, %s250
      %p254 = scmp.eq.s32.totalorder %s25, 0
      %p255 = por %p253, %p254
      %p256 = scmp.ne.s32.totalorder %s248, %s250
      %p257 = scmp.eq.s32.totalorder %s30, 1
      %p258 = por %p256, %p257
      %p259 = scmp.ne.s32.totalorder %s250, %s251
      %p260 = scmp.eq.s32.totalorder %s30, 0
      %p261 = por %p259, %p260
      %p262 = scmp.ne.s32.totalorder %s250, %s251
      %p263 = scmp.eq.s32.totalorder %s31, 1
      %p264 = por %p262, %p263
      %p266 = scmp.ne.s32.totalorder %s251, %s265
      %p267 = scmp.eq.s32.totalorder %s31, 0
      %p268 = por %p266, %p267
      %s270 = sadd.s32 %s269, 1
      %p273 = scmp.eq.s32.totalorder %s25, 1
      %p274 = scmp.ne.s32.totalorder %s269, %s271
      %p275 = scmp.eq.s32.totalorder %s25, 0
      %p276 = por %p274, %p275
      %p277 = scmp.ne.s32.totalorder %s269, %s271
      %p278 = scmp.eq.s32.totalorder %s30, 1
      %p279 = por %p277, %p278
      %p280 = scmp.ne.s32.totalorder %s271, %s272
      %p281 = scmp.eq.s32.totalorder %s30, 0
      %p282 = por %p280, %p281
      %p283 = scmp.ne.s32.totalorder %s271, %s272
      %p284 = scmp.eq.s32.totalorder %s31, 1
      %p285 = por %p283, %p284
      %p287 = scmp.ne.s32.totalorder %s272, %s286
      %p288 = scmp.eq.s32.totalorder %s31, 0
      %p289 = por %p287, %p288
      %s291 = sadd.s32 %s290, 1
      %p294 = scmp.eq.s32.totalorder %s25, 1
      %p295 = scmp.ne.s32.totalorder %s290, %s292
      %p296 = scmp.eq.s32.totalorder %s25, 0
      %p297 = por %p295, %p296
      %p298 = scmp.ne.s32.totalorder %s290, %s292
      %p299 = scmp.eq.s32.totalorder %s30, 1
      %p300 = por %p298, %p299
      %p301 = scmp.ne.s32.totalorder %s292, %s293
      %p302 = scmp.eq.s32.totalorder %s30, 0
      %p303 = por %p301, %p302
      %p304 = scmp.ne.s32.totalorder %s292, %s293
      %p305 = scmp.eq.s32.totalorder %s31, 1
      %p306 = por %p304, %p305
      %p308 = scmp.ne.s32.totalorder %s293, %s307
      %p309 = scmp.eq.s32.totalorder %s31, 0
      %p310 = por %p308, %p309
      %s311 = ssub.s32 %s25, %s32
      %p312 = scmp.eq.s32.totalorder %s311, 0
      %s314 = sadd.s32 %s313, 1
      %s315 = scalar_select %p312, %s313, %s314
      %p318 = pneg %p312
      %p319 = scmp.eq.s32.totalorder %s25, 1
      %p320 = por %p318, %p319
      %p321 = scmp.ne.s32.totalorder %s313, %s316
      %p322 = scmp.eq.s32.totalorder %s25, 0
      %p323 = por %p321, %p322
      %p324 = scmp.ne.s32.totalorder %s313, %s316
      %p325 = scmp.eq.s32.totalorder %s30, 1
      %p326 = por %p324, %p325
      %p327 = scmp.ne.s32.totalorder %s316, %s317
      %p328 = scmp.eq.s32.totalorder %s30, 0
      %p329 = por %p327, %p328
      %p330 = scmp.ne.s32.totalorder %s316, %s317
      %p331 = scmp.eq.s32.totalorder %s31, 1
      %p332 = por %p330, %p331
      %p334 = scmp.ne.s32.totalorder %s317, %s333
      %p335 = scmp.eq.s32.totalorder %s31, 0
      %p336 = por %p334, %p335
      %p337 = scmp.le.s32.totalorder 1, %s25
      %p338 = scmp.lt.s32.totalorder %s25, 3
      %p339 = pnand %p337, %p338
      %p340 = pneg %p339
      // Predicated region
      $region9: #{tpu_custom_call.1} parent=5 // pred_check
        _
      $region10: #{tpu_custom_call.1} parent=5 // pred_check_branch
        %342 = sbr.rel (%p339) target = $region12
      $region11: #{tpu_custom_call.1} parent=5 // pred_region
        %s343 = ssub.s32 %s25, 1
        // Predicated region
        $region13: #{tpu_custom_call.1} parent=11 // pred_check
          %p344 = pneg %p72
        $region14: #{tpu_custom_call.1} parent=11 // pred_check_branch
          %346 = sbr.rel (%p344) target = $region16
        $region15: #{tpu_custom_call.1} parent=11 // pred_region
          _
        $region16: #{tpu_custom_call.1} parent=11 // pred_fallthru
          _
        // Predicated region
        $region17: #{tpu_custom_call.1} parent=11 // pred_check
          %p347 = pneg %p93
        $region18: #{tpu_custom_call.1} parent=11 // pred_check_branch
          %349 = sbr.rel (%p347) target = $region20
        $region19: #{tpu_custom_call.1} parent=11 // pred_region
          _
        $region20: #{tpu_custom_call.1} parent=11 // pred_fallthru
          _
        // Predicated region
        $region21: #{tpu_custom_call.1} parent=11 // pred_check
          %p350 = pneg %p114
        $region22: #{tpu_custom_call.1} parent=11 // pred_check_branch
          %352 = sbr.rel (%p350) target = $region24
        $region23: #{tpu_custom_call.1} parent=11 // pred_region
          _
        $region24: #{tpu_custom_call.1} parent=11 // pred_fallthru
          _
        // Predicated region
        $region25: #{tpu_custom_call.1} parent=11 // pred_check
          %p353 = pneg %p135
        $region26: #{tpu_custom_call.1} parent=11 // pred_check_branch
          %355 = sbr.rel (%p353) target = $region28
        $region27: #{tpu_custom_call.1} parent=11 // pred_region
          %s357 = ssub.s32 16, 16
          %358 = vsyncadd [#allocation3], %s357
          %s360 = sshll.u32 [#allocation2], 4
          %s361 = int_to_ptr.vmem [resolvable:$true] %s360
          %363 = dma.hbm_to_vmem [thread:$0]  %s4, 16, %s361, [#allocation3]
        $region28: #{tpu_custom_call.1} parent=11 // pred_fallthru
          _
        // Predicated region
        $region29: #{tpu_custom_call.1} parent=11 // pred_check
          %p364 = pneg %p156
        $region30: #{tpu_custom_call.1} parent=11 // pred_check_branch
          %366 = sbr.rel (%p364) target = $region32
        $region31: #{tpu_custom_call.1} parent=11 // pred_region
          _
        $region32: #{tpu_custom_call.1} parent=11 // pred_fallthru
          _
        // Predicated region
        $region33: #{tpu_custom_call.1} parent=11 // pred_check
          %p367 = pneg %p177
        $region34: #{tpu_custom_call.1} parent=11 // pred_check_branch
          %369 = sbr.rel (%p367) target = $region36
        $region35: #{tpu_custom_call.1} parent=11 // pred_region
          %s371 = ssub.s32 16, 16
          %372 = vsyncadd [#allocation6], %s371
          %s374 = sshll.u32 [#allocation5], 4
          %s375 = int_to_ptr.vmem [resolvable:$true] %s374
          %377 = dma.hbm_to_vmem [thread:$0]  %s6, 16, %s375, [#allocation6]
        $region36: #{tpu_custom_call.1} parent=11 // pred_fallthru
          _
        // Predicated region
        $region37: #{tpu_custom_call.1} parent=11 // pred_check
          %p378 = pneg %p198
        $region38: #{tpu_custom_call.1} parent=11 // pred_check_branch
          %380 = sbr.rel (%p378) target = $region40
        $region39: #{tpu_custom_call.1} parent=11 // pred_region
          %s382 = ssub.s32 16, 16
          %383 = vsyncadd [#allocation6], %s382
          %s385 = sshll.u32 [#allocation7], 4
          %s386 = int_to_ptr.vmem [resolvable:$true] %s385
          %388 = dma.hbm_to_vmem [thread:$0]  %s7, 16, %s386, [#allocation6]
        $region40: #{tpu_custom_call.1} parent=11 // pred_fallthru
          _
        // Predicated region
        $region41: #{tpu_custom_call.1} parent=11 // pred_check
          %p389 = pneg %p219
        $region42: #{tpu_custom_call.1} parent=11 // pred_check_branch
          %391 = sbr.rel (%p389) target = $region44
        $region43: #{tpu_custom_call.1} parent=11 // pred_region
          %s393 = ssub.s32 16, 16
          %394 = vsyncadd [#allocation9], %s393
          %s396 = sshll.u32 [#allocation8], 4
          %s397 = int_to_ptr.vmem [resolvable:$true] %s396
          %399 = dma.hbm_to_vmem [thread:$0]  %s8, 16, %s397, [#allocation9]
        $region44: #{tpu_custom_call.1} parent=11 // pred_fallthru
          _
        // Predicated region
        $region45: #{tpu_custom_call.1} parent=11 // pred_check
          %p400 = pneg %p240
        $region46: #{tpu_custom_call.1} parent=11 // pred_check_branch
          %402 = sbr.rel (%p400) target = $region48
        $region47: #{tpu_custom_call.1} parent=11 // pred_region
          _
        $region48: #{tpu_custom_call.1} parent=11 // pred_fallthru
          _
        // Predicated region
        $region49: #{tpu_custom_call.1} parent=11 // pred_check
          %p403 = pneg %p261
        $region50: #{tpu_custom_call.1} parent=11 // pred_check_branch
          %405 = sbr.rel (%p403) target = $region52
        $region51: #{tpu_custom_call.1} parent=11 // pred_region
          _
        $region52: #{tpu_custom_call.1} parent=11 // pred_fallthru
          _
        // Predicated region
        $region53: #{tpu_custom_call.1} parent=11 // pred_check
          %p406 = pneg %p282
        $region54: #{tpu_custom_call.1} parent=11 // pred_check_branch
          %408 = sbr.rel (%p406) target = $region56
        $region55: #{tpu_custom_call.1} parent=11 // pred_region
          _
        $region56: #{tpu_custom_call.1} parent=11 // pred_fallthru
          _
        // Predicated region
        $region57: #{tpu_custom_call.1} parent=11 // pred_check
          %p409 = pneg %p303
        $region58: #{tpu_custom_call.1} parent=11 // pred_check_branch
          %411 = sbr.rel (%p409) target = $region60
        $region59: #{tpu_custom_call.1} parent=11 // pred_region
          _
        $region60: #{tpu_custom_call.1} parent=11 // pred_fallthru
          _
      $region12: #{tpu_custom_call.1} parent=5 // pred_fallthru
        _
      %p412 = scmp.lt.s32.totalorder %s25, 2
      // Predicated region
      $region61: #{tpu_custom_call.1} parent=5 // pred_check
        %p413 = pneg %p412
      $region62: #{tpu_custom_call.1} parent=5 // pred_check_branch
        %415 = sbr.rel (%p413) target = $region64
      $region63: #{tpu_custom_call.1} parent=5 // pred_region
        // Predicated region
        $region65: #{tpu_custom_call.1} parent=63 // pred_check
          %p416 = pneg %p45
        $region66: #{tpu_custom_call.1} parent=63 // pred_check_branch
          %418 = sbr.rel (%p416) target = $region68
        $region67: #{tpu_custom_call.1} parent=63 // pred_region
          %p419 = scmp.lt.s32.totalorder %s25, 1
          %s420 = scalar_select %p419, %s25, 1
          %s421 = smul.addr %s420, 8
          %s422 = scalar_lea.vmem %s0, %s421
        $region68: #{tpu_custom_call.1} parent=63 // pred_fallthru
          _
      $region64: #{tpu_custom_call.1} parent=5 // pred_fallthru
        _
      %p423 = scmp.le.s32.totalorder 1, %s25
      %p424 = scmp.lt.s32.totalorder %s25, 3
      %p425 = pnand %p423, %p424
      %p426 = pneg %p425
      // Predicated region
      $region69: #{tpu_custom_call.1} parent=5 // pred_check
        _
      $region70: #{tpu_custom_call.1} parent=5 // pred_check_branch
        %428 = sbr.rel (%p425) target = $region72
      $region71: #{tpu_custom_call.1} parent=5 // pred_region
        %s429 = ssub.s32 %s25, 1
        // Predicated region
        $region73: #{tpu_custom_call.1} parent=71 // pred_check
          %p430 = pneg %p135
        $region74: #{tpu_custom_call.1} parent=71 // pred_check_branch
          %432 = sbr.rel (%p430) target = $region76
        $region75: #{tpu_custom_call.1} parent=71 // pred_region
          %433 = dma.done [#allocation3], 16
        $region76: #{tpu_custom_call.1} parent=71 // pred_fallthru
          _
        // Predicated region
        $region77: #{tpu_custom_call.1} parent=71 // pred_check
          %p434 = pneg %p177
        $region78: #{tpu_custom_call.1} parent=71 // pred_check_branch
          %436 = sbr.rel (%p434) target = $region80
        $region79: #{tpu_custom_call.1} parent=71 // pred_region
          %437 = dma.done [#allocation6], 16
        $region80: #{tpu_custom_call.1} parent=71 // pred_fallthru
          _
        // Predicated region
        $region81: #{tpu_custom_call.1} parent=71 // pred_check
          %p438 = pneg %p198
        $region82: #{tpu_custom_call.1} parent=71 // pred_check_branch
          %440 = sbr.rel (%p438) target = $region84
        $region83: #{tpu_custom_call.1} parent=71 // pred_region
          %441 = dma.done [#allocation6], 16
        $region84: #{tpu_custom_call.1} parent=71 // pred_fallthru
          _
        // Predicated region
        $region85: #{tpu_custom_call.1} parent=71 // pred_check
          %p442 = pneg %p219
        $region86: #{tpu_custom_call.1} parent=71 // pred_check_branch
          %444 = sbr.rel (%p442) target = $region88
        $region87: #{tpu_custom_call.1} parent=71 // pred_region
          %445 = dma.done [#allocation9], 16
        $region88: #{tpu_custom_call.1} parent=71 // pred_fallthru
          _
        %p446 = scmp.lt.s32.totalorder %s30, 1
        %s447 = scalar_select %p446, %s30, 1
        %s448 = smul.addr %s447, 8
        %s449 = scalar_lea.vmem %s0, %s448
        %p450 = pneg %p51
        %p451 = pneg %p48
        %p452 = pneg %p72
        %p453 = pneg %p69
        %p454 = pneg %p93
        %p455 = pneg %p90
        %p456 = pneg %p114
        %p457 = pneg %p111
        %p458 = pneg %p135
        %p459 = pneg %p132
        %p460 = pneg %p156
        %p461 = pneg %p153
        %p462 = pneg %p177
        %p463 = pneg %p174
        %p464 = pneg %p198
        %p465 = pneg %p195
        %p466 = pneg %p219
        %p467 = pneg %p216
        %p468 = pneg %p240
        %p469 = pneg %p237
        %p470 = pneg %p261
        %p471 = pneg %p258
        %p472 = pneg %p282
        %p473 = pneg %p279
        %p474 = pneg %p303
        %p475 = pneg %p300
        %p476 = pneg %p329
        %p477 = pneg %p326
        %s478 = sand.u32 %s316, 1
        %s479 = scalar_lea.sflag [#allocation4], %s478
        %s480 = sand.u32 %s316, 1
        %s481 = smul.addr %s480, 8
        %s482 = scalar_lea.vmem [#allocation10], %s481
        %p483 = scmp.lt.s32.totalorder %s30, 1
        %s484 = scalar_select %p483, %s30, 1
        %s485 = smul.addr %s484, 8
        %s486 = scalar_lea.vmem %s0, %s485
        %v488 = vld [vmem:[%s486] sm:$0xff]
        %vm489 = vcmask 261120
        %v490 = vsel %vm489, %v488, 0.0
        %491 = vadd.xlane.f32.xlu0 %v490
        %v492 = vpop.xlane.xlu0 %491
        %v493 = vrcp.pop 32.0
        %v494 = vmul.f32 %v492, %v493
        %v495 = vsub.f32 %v488, %v494
        %v496 = vmul.f32 %v495, %v495
        %v497 = vsel %vm489, %v496, 0.0
        %498 = vadd.xlane.f32.xlu0 %v497
        %v499 = vpop.xlane.xlu0 %498
        %v500 = vmul.f32 %v499, %v493
        %v501 = vadd.f32 %v500, 1e-05
        %v502 = vrsqrt.pop %v501
        %v503 = vmul.f32 %v495, %v502
        %v504 = vld [vmem:[%s1] sm:$0x1]
        %v506 = vlaneseq
        %v507 = vshrl.u32 %v506, 7
        %v508 = vsub.s32 0, %v507
        %v509 = vrot.slane %v504, %v508
        %v511 = vmul.f32 %v503, %v509
        %v512 = vld [vmem:[%s2] sm:$0x1]
        %v514 = vlaneseq
        %v515 = vshrl.u32 %v514, 7
        %v516 = vsub.s32 0, %v515
        %v517 = vrot.slane %v512, %v516
        %v519 = vadd.f32 %v511, %v517
        %v520 = vpack.c.bf16 %v519, %v519
        %v521 = vld [vmem:[%s3] sm:$0xf]
        %v522 = vld [vmem:[%s3 + $0x4] sm:$0xf]
        %v523 = vld [vmem:[%s3 + $0x8] sm:$0xf]
        %v524 = vld [vmem:[%s3 + $0xc] sm:$0xf]
        %v525 = vld [vmem:[#allocation2] sm:$0x1]
        %v527 = vlaneseq
        %v528 = vshrl.u32 %v527, 7
        %v529 = vsub.s32 0, %v528
        %v530 = vrot.slane %v525, %v529
        %v536 = vunpack.c.l.b16 %v521
        %v537 = vunpack.c.l.b16 %v522
        %v538 = vunpack.c.l.b16 %v523
        %v539 = vunpack.c.l.b16 %v524
        %v540 = vpack.c.b16 %v537, %v536
        %v541 = vpack.c.b16 %v539, %v538
        %v545 = vsel %vm489, %v520, 0
        %547 = vmatprep.subr.bf16.mxu0 0
        %548 = vmatpush1.bf16.msra.mxu0 %v540
        %549 = vmatprep.subr.bf16.mxu0 0
        %550 = vmatpush1.bf16.msra.mxu0 %v541
        %551 = vmatprep.subr.bf16.mxu0 0
        %552 = vmatpush1.bf16.msra.mxu0 0
        %553 = vmatprep.subr.bf16.mxu0 0
        %554 = vmatpush1.bf16.msra.mxu0 0
        %555 = vmatprep.subr.bf16.mxu0 0
        %556 = vmatpush1.bf16.msra.mxu0 0
        %557 = vmatprep.subr.bf16.mxu0 0
        %558 = vmatpush1.bf16.msra.mxu0 0
        %559 = vmatprep.subr.bf16.mxu0 0
        %560 = vmatpush1.bf16.msra.mxu0 0
        %561 = vmatprep.subr.bf16.mxu0 0
        %562 = vmatpush1.bf16.msra.mxu0 0
        %563 = vmatprep.subr.bf16.mxu0 0
        %564 = vmatpush1.bf16.msra.mxu0 0
        %565 = vmatprep.subr.bf16.mxu0 0
        %566 = vmatpush1.bf16.msra.mxu0 0
        %567 = vmatprep.subr.bf16.mxu0 0
        %568 = vmatpush1.bf16.msra.mxu0 0
        %569 = vmatprep.subr.bf16.mxu0 0
        %570 = vmatpush1.bf16.msra.mxu0 0
        %571 = vmatprep.subr.bf16.mxu0 0
        %572 = vmatpush1.bf16.msra.mxu0 0
        %573 = vmatprep.subr.bf16.mxu0 0
        %574 = vmatpush1.bf16.msra.mxu0 0
        %575 = vmatprep.subr.bf16.mxu0 0
        %576 = vmatpush1.bf16.msra.mxu0 0
        %577 = vmatprep.subr.bf16.mxu0 0
        %578 = vmatpush1.bf16.msra.mxu0 0
        %579 = vmatprep.mubr.bf16.mxu0 0
        %580 = vmatmul.mubr.bf16.gmra.mrb[0].mxu0 %v545
        %v581 = vpop.f32.mrb[0].mxu0
        %v582 = vadd.f32 %v530, %v581
        %v583 = vpop.f32.mrb[0].mxu0
        %v584 = vpop.f32.mrb[0].mxu0
        %v585 = vpop.f32.mrb[0].mxu0
        %586 = vdwg.mxu0
        %588 = vrot.lane.b32.xlu0 %v582, 120
        %v589 = vpop.permute.xlu0 %588
        %591 = vrot.lane.b32.xlu0 %v582, 112
        %v592 = vpop.permute.xlu0 %591
        %594 = vrot.lane.b32.xlu0 %v582, 104
        %v595 = vpop.permute.xlu0 %594
        %v597 = vcombine.low %v582, %v592
        %v598 = vcombine.high %v582, %v592
        %v600 = vunpack.c.l.s4 1983009808
        %v601 = vunpack.c.0.s8 %v600
        %v602 = vlaneseq
        %v603 = vshrl.u32 %v602, 7
        %v604 = vsub.s32 %v601, %v603
        %v605 = vrot.slane %v597, %v604
        %v607 = vunpack.c.l.s4 1983009808
        %v608 = vunpack.c.0.s8 %v607
        %v609 = vlaneseq
        %v610 = vshrl.u32 %v609, 7
        %v611 = vsub.s32 %v608, %v610
        %v612 = vrot.slane %v598, %v611
        %v613 = vcombine.low %v589, %v595
        %v614 = vcombine.high %v589, %v595
        %v616 = vunpack.c.l.s4 1983009808
        %v617 = vunpack.c.0.s8 %v616
        %v618 = vlaneseq
        %v619 = vshrl.u32 %v618, 7
        %v620 = vsub.s32 %v617, %v619
        %v621 = vrot.slane %v613, %v620
        %v623 = vunpack.c.l.s4 1983009808
        %v624 = vunpack.c.0.s8 %v623
        %v625 = vlaneseq
        %v626 = vshrl.u32 %v625, 7
        %v627 = vsub.s32 %v624, %v626
        %v628 = vrot.slane %v614, %v627
        %v629 = vcombine.low %v605, %v621
        %v630 = vcombine.high %v605, %v621
        %v632 = vunpack.c.l.s4 1934713408
        %v633 = vunpack.c.0.s8 %v632
        %v634 = vlaneseq
        %v635 = vshrl.u32 %v634, 7
        %v636 = vsub.s32 %v633, %v635
        %v637 = vrot.slane %v629, %v636
        %v639 = vunpack.c.l.s4 1934713408
        %v640 = vunpack.c.0.s8 %v639
        %v641 = vlaneseq
        %v642 = vshrl.u32 %v641, 7
        %v643 = vsub.s32 %v640, %v642
        %v644 = vrot.slane %v630, %v643
        %v645 = vcombine.low %v612, %v628
        %v646 = vcombine.high %v612, %v628
        %v648 = vunpack.c.l.s4 1934713408
        %v649 = vunpack.c.0.s8 %v648
        %v650 = vlaneseq
        %v651 = vshrl.u32 %v650, 7
        %v652 = vsub.s32 %v649, %v651
        %v653 = vrot.slane %v645, %v652
        %v655 = vunpack.c.l.s4 1934713408
        %v656 = vunpack.c.0.s8 %v655
        %v657 = vlaneseq
        %v658 = vshrl.u32 %v657, 7
        %v659 = vsub.s32 %v656, %v658
        %v660 = vrot.slane %v646, %v659
        %v661 = vcombine.high %v637, 0.0
        %v662 = vcombine.high %v644, 0.0
        %v663 = vcombine.high %v653, 0.0
        %v664 = vcombine.high %v660, 0.0
        %v665 = vcombine.low %v637, %v644
        %v667 = vunpack.c.l.s4 1983009808
        %v668 = vunpack.c.0.s8 %v667
        %v669 = vlaneseq
        %v670 = vshrl.u32 %v669, 7
        %v671 = vsub.s32 %v668, %v670
        %v672 = vrot.slane %v665, %v671
        %v673 = vcombine.low %v661, %v662
        %v675 = vunpack.c.l.s4 1983009808
        %v676 = vunpack.c.0.s8 %v675
        %v677 = vlaneseq
        %v678 = vshrl.u32 %v677, 7
        %v679 = vsub.s32 %v676, %v678
        %v680 = vrot.slane %v673, %v679
        %v681 = vcombine.low %v653, %v660
        %v683 = vunpack.c.l.s4 1983009808
        %v684 = vunpack.c.0.s8 %v683
        %v685 = vlaneseq
        %v686 = vshrl.u32 %v685, 7
        %v687 = vsub.s32 %v684, %v686
        %v688 = vrot.slane %v681, %v687
        %v689 = vcombine.low %v663, %v664
        %v691 = vunpack.c.l.s4 1983009808
        %v692 = vunpack.c.0.s8 %v691
        %v693 = vlaneseq
        %v694 = vshrl.u32 %v693, 7
        %v695 = vsub.s32 %v692, %v694
        %v696 = vrot.slane %v689, %v695
        %v697 = vcombine.low %v672, %v680
        %v698 = vcombine.high %v672, %v680
        %v700 = vunpack.c.l.s4 1934713408
        %v701 = vunpack.c.0.s8 %v700
        %v702 = vlaneseq
        %v703 = vshrl.u32 %v702, 7
        %v704 = vsub.s32 %v701, %v703
        %v705 = vrot.slane %v697, %v704
        %v707 = vunpack.c.l.s4 1934713408
        %v708 = vunpack.c.0.s8 %v707
        %v709 = vlaneseq
        %v710 = vshrl.u32 %v709, 7
        %v711 = vsub.s32 %v708, %v710
        %v712 = vrot.slane %v698, %v711
        %v713 = vcombine.low %v688, %v696
        %v714 = vcombine.high %v688, %v696
        %v716 = vunpack.c.l.s4 1934713408
        %v717 = vunpack.c.0.s8 %v716
        %v718 = vlaneseq
        %v719 = vshrl.u32 %v718, 7
        %v720 = vsub.s32 %v717, %v719
        %v721 = vrot.slane %v713, %v720
        %v723 = vunpack.c.l.s4 1934713408
        %v724 = vunpack.c.0.s8 %v723
        %v725 = vlaneseq
        %v726 = vshrl.u32 %v725, 7
        %v727 = vsub.s32 %v724, %v726
        %v728 = vrot.slane %v714, %v727
        %v729 = vcombine.low %v705, %v721
        %v730 = vcombine.high %v705, %v721
        %v731 = vcombine.low %v712, %v728
        %v732 = vcombine.high %v712, %v728
        %v733 = vpack.c.bf16 %v729, %v729
        %v734 = vpack.c.bf16 %v730, %v730
        %v735 = vpack.c.bf16 %v731, %v731
        %v736 = vpack.c.bf16 %v732, %v732
        %737 = vrot.lane.b32.xlu0 %v582, 96
        %v738 = vpop.permute.xlu0 %737
        %739 = vrot.lane.b32.xlu0 %v589, 96
        %v740 = vpop.permute.xlu0 %739
        %741 = vrot.lane.b32.xlu0 %v592, 96
        %v742 = vpop.permute.xlu0 %741
        %743 = vrot.lane.b32.xlu0 %v595, 96
        %v744 = vpop.permute.xlu0 %743
        %v749 = vcombine.low %v738, %v742
        %v750 = vcombine.high %v738, %v742
        %v752 = vunpack.c.l.s4 1983009808
        %v753 = vunpack.c.0.s8 %v752
        %v754 = vlaneseq
        %v755 = vshrl.u32 %v754, 7
        %v756 = vsub.s32 %v753, %v755
        %v757 = vrot.slane %v749, %v756
        %v759 = vunpack.c.l.s4 1983009808
        %v760 = vunpack.c.0.s8 %v759
        %v761 = vlaneseq
        %v762 = vshrl.u32 %v761, 7
        %v763 = vsub.s32 %v760, %v762
        %v764 = vrot.slane %v750, %v763
        %v765 = vcombine.low %v740, %v744
        %v766 = vcombine.high %v740, %v744
        %v768 = vunpack.c.l.s4 1983009808
        %v769 = vunpack.c.0.s8 %v768
        %v770 = vlaneseq
        %v771 = vshrl.u32 %v770, 7
        %v772 = vsub.s32 %v769, %v771
        %v773 = vrot.slane %v765, %v772
        %v775 = vunpack.c.l.s4 1983009808
        %v776 = vunpack.c.0.s8 %v775
        %v777 = vlaneseq
        %v778 = vshrl.u32 %v777, 7
        %v779 = vsub.s32 %v776, %v778
        %v780 = vrot.slane %v766, %v779
        %v781 = vcombine.low %v757, %v773
        %v782 = vcombine.high %v757, %v773
        %v784 = vunpack.c.l.s4 1934713408
        %v785 = vunpack.c.0.s8 %v784
        %v786 = vlaneseq
        %v787 = vshrl.u32 %v786, 7
        %v788 = vsub.s32 %v785, %v787
        %v789 = vrot.slane %v781, %v788
        %v791 = vunpack.c.l.s4 1934713408
        %v792 = vunpack.c.0.s8 %v791
        %v793 = vlaneseq
        %v794 = vshrl.u32 %v793, 7
        %v795 = vsub.s32 %v792, %v794
        %v796 = vrot.slane %v782, %v795
        %v797 = vcombine.low %v764, %v780
        %v798 = vcombine.high %v764, %v780
        %v800 = vunpack.c.l.s4 1934713408
        %v801 = vunpack.c.0.s8 %v800
        %v802 = vlaneseq
        %v803 = vshrl.u32 %v802, 7
        %v804 = vsub.s32 %v801, %v803
        %v805 = vrot.slane %v797, %v804
        %v807 = vunpack.c.l.s4 1934713408
        %v808 = vunpack.c.0.s8 %v807
        %v809 = vlaneseq
        %v810 = vshrl.u32 %v809, 7
        %v811 = vsub.s32 %v808, %v810
        %v812 = vrot.slane %v798, %v811
        %v813 = vcombine.high %v789, 0.0
        %v814 = vcombine.high %v796, 0.0
        %v815 = vcombine.high %v805, 0.0
        %v816 = vcombine.high %v812, 0.0
        %v817 = vcombine.low %v789, %v796
        %v819 = vunpack.c.l.s4 1983009808
        %v820 = vunpack.c.0.s8 %v819
        %v821 = vlaneseq
        %v822 = vshrl.u32 %v821, 7
        %v823 = vsub.s32 %v820, %v822
        %v824 = vrot.slane %v817, %v823
        %v825 = vcombine.low %v813, %v814
        %v827 = vunpack.c.l.s4 1983009808
        %v828 = vunpack.c.0.s8 %v827
        %v829 = vlaneseq
        %v830 = vshrl.u32 %v829, 7
        %v831 = vsub.s32 %v828, %v830
        %v832 = vrot.slane %v825, %v831
        %v833 = vcombine.low %v805, %v812
        %v835 = vunpack.c.l.s4 1983009808
        %v836 = vunpack.c.0.s8 %v835
        %v837 = vlaneseq
        %v838 = vshrl.u32 %v837, 7
        %v839 = vsub.s32 %v836, %v838
        %v840 = vrot.slane %v833, %v839
        %v841 = vcombine.low %v815, %v816
        %v843 = vunpack.c.l.s4 1983009808
        %v844 = vunpack.c.0.s8 %v843
        %v845 = vlaneseq
        %v846 = vshrl.u32 %v845, 7
        %v847 = vsub.s32 %v844, %v846
        %v848 = vrot.slane %v841, %v847
        %v849 = vcombine.low %v824, %v832
        %v850 = vcombine.high %v824, %v832
        %v852 = vunpack.c.l.s4 1934713408
        %v853 = vunpack.c.0.s8 %v852
        %v854 = vlaneseq
        %v855 = vshrl.u32 %v854, 7
        %v856 = vsub.s32 %v853, %v855
        %v857 = vrot.slane %v849, %v856
        %v859 = vunpack.c.l.s4 1934713408
        %v860 = vunpack.c.0.s8 %v859
        %v861 = vlaneseq
        %v862 = vshrl.u32 %v861, 7
        %v863 = vsub.s32 %v860, %v862
        %v864 = vrot.slane %v850, %v863
        %v865 = vcombine.low %v840, %v848
        %v866 = vcombine.high %v840, %v848
        %v868 = vunpack.c.l.s4 1934713408
        %v869 = vunpack.c.0.s8 %v868
        %v870 = vlaneseq
        %v871 = vshrl.u32 %v870, 7
        %v872 = vsub.s32 %v869, %v871
        %v873 = vrot.slane %v865, %v872
        %v875 = vunpack.c.l.s4 1934713408
        %v876 = vunpack.c.0.s8 %v875
        %v877 = vlaneseq
        %v878 = vshrl.u32 %v877, 7
        %v879 = vsub.s32 %v876, %v878
        %v880 = vrot.slane %v866, %v879
        %v881 = vcombine.low %v857, %v873
        %v882 = vcombine.high %v857, %v873
        %v883 = vcombine.low %v864, %v880
        %v884 = vcombine.high %v864, %v880
        %v885 = vpack.c.bf16 %v881, %v881
        %v886 = vpack.c.bf16 %v882, %v882
        %v887 = vpack.c.bf16 %v883, %v883
        %v888 = vpack.c.bf16 %v884, %v884
        %889 = vrot.lane.b32.xlu0 %v582, 64
        %v890 = vpop.permute.xlu0 %889
        %891 = vrot.lane.b32.xlu0 %v589, 64
        %v892 = vpop.permute.xlu0 %891
        %893 = vrot.lane.b32.xlu0 %v592, 64
        %v894 = vpop.permute.xlu0 %893
        %895 = vrot.lane.b32.xlu0 %v595, 64
        %v896 = vpop.permute.xlu0 %895
        %v901 = vcombine.low %v890, %v894
        %v902 = vcombine.high %v890, %v894
        %v904 = vunpack.c.l.s4 1983009808
        %v905 = vunpack.c.0.s8 %v904
        %v906 = vlaneseq
        %v907 = vshrl.u32 %v906, 7
        %v908 = vsub.s32 %v905, %v907
        %v909 = vrot.slane %v901, %v908
        %v911 = vunpack.c.l.s4 1983009808
        %v912 = vunpack.c.0.s8 %v911
        %v913 = vlaneseq
        %v914 = vshrl.u32 %v913, 7
        %v915 = vsub.s32 %v912, %v914
        %v916 = vrot.slane %v902, %v915
        %v917 = vcombine.low %v892, %v896
        %v918 = vcombine.high %v892, %v896
        %v920 = vunpack.c.l.s4 1983009808
        %v921 = vunpack.c.0.s8 %v920
        %v922 = vlaneseq
        %v923 = vshrl.u32 %v922, 7
        %v924 = vsub.s32 %v921, %v923
        %v925 = vrot.slane %v917, %v924
        %v927 = vunpack.c.l.s4 1983009808
        %v928 = vunpack.c.0.s8 %v927
        %v929 = vlaneseq
        %v930 = vshrl.u32 %v929, 7
        %v931 = vsub.s32 %v928, %v930
        %v932 = vrot.slane %v918, %v931
        %v933 = vcombine.low %v909, %v925
        %v934 = vcombine.high %v909, %v925
        %v936 = vunpack.c.l.s4 1934713408
        %v937 = vunpack.c.0.s8 %v936
        %v938 = vlaneseq
        %v939 = vshrl.u32 %v938, 7
        %v940 = vsub.s32 %v937, %v939
        %v941 = vrot.slane %v933, %v940
        %v943 = vunpack.c.l.s4 1934713408
        %v944 = vunpack.c.0.s8 %v943
        %v945 = vlaneseq
        %v946 = vshrl.u32 %v945, 7
        %v947 = vsub.s32 %v944, %v946
        %v948 = vrot.slane %v934, %v947
        %v949 = vcombine.low %v916, %v932
        %v950 = vcombine.high %v916, %v932
        %v952 = vunpack.c.l.s4 1934713408
        %v953 = vunpack.c.0.s8 %v952
        %v954 = vlaneseq
        %v955 = vshrl.u32 %v954, 7
        %v956 = vsub.s32 %v953, %v955
        %v957 = vrot.slane %v949, %v956
        %v959 = vunpack.c.l.s4 1934713408
        %v960 = vunpack.c.0.s8 %v959
        %v961 = vlaneseq
        %v962 = vshrl.u32 %v961, 7
        %v963 = vsub.s32 %v960, %v962
        %v964 = vrot.slane %v950, %v963
        %v965 = vcombine.high %v941, 0.0
        %v966 = vcombine.high %v948, 0.0
        %v967 = vcombine.high %v957, 0.0
        %v968 = vcombine.high %v964, 0.0
        %v969 = vcombine.low %v941, %v948
        %v971 = vunpack.c.l.s4 1983009808
        %v972 = vunpack.c.0.s8 %v971
        %v973 = vlaneseq
        %v974 = vshrl.u32 %v973, 7
        %v975 = vsub.s32 %v972, %v974
        %v976 = vrot.slane %v969, %v975
        %v977 = vcombine.low %v965, %v966
        %v979 = vunpack.c.l.s4 1983009808
        %v980 = vunpack.c.0.s8 %v979
        %v981 = vlaneseq
        %v982 = vshrl.u32 %v981, 7
        %v983 = vsub.s32 %v980, %v982
        %v984 = vrot.slane %v977, %v983
        %v985 = vcombine.low %v957, %v964
        %v987 = vunpack.c.l.s4 1983009808
        %v988 = vunpack.c.0.s8 %v987
        %v989 = vlaneseq
        %v990 = vshrl.u32 %v989, 7
        %v991 = vsub.s32 %v988, %v990
        %v992 = vrot.slane %v985, %v991
        %v993 = vcombine.low %v967, %v968
        %v995 = vunpack.c.l.s4 1983009808
        %v996 = vunpack.c.0.s8 %v995
        %v997 = vlaneseq
        %v998 = vshrl.u32 %v997, 7
        %v999 = vsub.s32 %v996, %v998
        %v1000 = vrot.slane %v993, %v999
        %v1001 = vcombine.low %v976, %v984
        %v1002 = vcombine.high %v976, %v984
        %v1004 = vunpack.c.l.s4 1934713408
        %v1005 = vunpack.c.0.s8 %v1004
        %v1006 = vlaneseq
        %v1007 = vshrl.u32 %v1006, 7
        %v1008 = vsub.s32 %v1005, %v1007
        %v1009 = vrot.slane %v1001, %v1008
        %v1011 = vunpack.c.l.s4 1934713408
        %v1012 = vunpack.c.0.s8 %v1011
        %v1013 = vlaneseq
        %v1014 = vshrl.u32 %v1013, 7
        %v1015 = vsub.s32 %v1012, %v1014
        %v1016 = vrot.slane %v1002, %v1015
        %v1017 = vcombine.low %v992, %v1000
        %v1018 = vcombine.high %v992, %v1000
        %v1020 = vunpack.c.l.s4 1934713408
        %v1021 = vunpack.c.0.s8 %v1020
        %v1022 = vlaneseq
        %v1023 = vshrl.u32 %v1022, 7
        %v1024 = vsub.s32 %v1021, %v1023
        %v1025 = vrot.slane %v1017, %v1024
        %v1027 = vunpack.c.l.s4 1934713408
        %v1028 = vunpack.c.0.s8 %v1027
        %v1029 = vlaneseq
        %v1030 = vshrl.u32 %v1029, 7
        %v1031 = vsub.s32 %v1028, %v1030
        %v1032 = vrot.slane %v1018, %v1031
        %v1033 = vcombine.low %v1009, %v1025
        %v1034 = vcombine.high %v1009, %v1025
        %v1035 = vcombine.low %v1016, %v1032
        %v1036 = vcombine.high %v1016, %v1032
        %v1037 = vpack.c.bf16 %v1033, %v1033
        %v1038 = vpack.c.bf16 %v1034, %v1034
        %v1039 = vpack.c.bf16 %v1035, %v1035
        %v1040 = vpack.c.bf16 %v1036, %v1036
        %vm1041 = vcmask 64512
        %v1043 = vsel %vm1041, %v733, 0
        %v1046 = vsel %vm1041, %v885, 0
        %1048 = vmatprep.subr.bf16.mxu0 0
        %1049 = vmatpush1.bf16.xpose.msra.mxu0 %v1046
        %1050 = vmatprep.subr.bf16.mxu0 0
        %1051 = vmatpush1.bf16.xpose.msra.mxu0 0
        %1052 = vmatprep.subr.bf16.mxu0 0
        %1053 = vmatpush1.bf16.xpose.msra.mxu0 0
        %1054 = vmatprep.subr.bf16.mxu0 0
        %1055 = vmatpush1.bf16.xpose.msra.mxu0 0
        %1056 = vmatprep.subr.bf16.mxu0 0
        %1057 = vmatpush1.bf16.xpose.msra.mxu0 0
        %1058 = vmatprep.subr.bf16.mxu0 0
        %1059 = vmatpush1.bf16.xpose.msra.mxu0 0
        %1060 = vmatprep.subr.bf16.mxu0 0
        %1061 = vmatpush1.bf16.xpose.msra.mxu0 0
        %1062 = vmatprep.subr.bf16.mxu0 0
        %1063 = vmatpush1.bf16.xpose.msra.mxu0 0
        %1064 = vmatprep.subr.bf16.mxu0 0
        %1065 = vmatpush1.bf16.xpose.msra.mxu0 0
        %1066 = vmatprep.subr.bf16.mxu0 0
        %1067 = vmatpush1.bf16.xpose.msra.mxu0 0
        %1068 = vmatprep.subr.bf16.mxu0 0
        %1069 = vmatpush1.bf16.xpose.msra.mxu0 0
        %1070 = vmatprep.subr.bf16.mxu0 0
        %1071 = vmatpush1.bf16.xpose.msra.mxu0 0
        %1072 = vmatprep.subr.bf16.mxu0 0
        %1073 = vmatpush1.bf16.xpose.msra.mxu0 0
        %1074 = vmatprep.subr.bf16.mxu0 0
        %1075 = vmatpush1.bf16.xpose.msra.mxu0 0
        %1076 = vmatprep.subr.bf16.mxu0 0
        %1077 = vmatpush1.bf16.xpose.msra.mxu0 0
        %1078 = vmatprep.subr.bf16.mxu0 0
        %1079 = vmatpush1.bf16.xpose.msra.mxu0 0
        %1080 = vmatprep.mubr.bf16.mxu0 0
        %1081 = vmatmul.mubr.bf16.gmra.mrb[0].mxu0 %v1043
        %v1082 = vpop.f32.mrb[0].mxu0
        %v1083 = vadd.f32 0.0, %v1082
        %v1084 = vpop.f32.mrb[0].mxu0
        %v1085 = vpop.f32.mrb[0].mxu0
        %v1086 = vpop.f32.mrb[0].mxu0
        %1087 = vdwg.mxu0
        %v1089 = vsel %vm1041, %v734, 0
        %v1092 = vsel %vm1041, %v886, 0
        %1094 = vmatprep.subr.bf16.mxu0 0
        %1095 = vmatpush1.bf16.xpose.msra.mxu0 %v1092
        %1096 = vmatprep.subr.bf16.mxu0 0
        %1097 = vmatpush1.bf16.xpose.msra.mxu0 0
        %1098 = vmatprep.subr.bf16.mxu0 0
        %1099 = vmatpush1.bf16.xpose.msra.mxu0 0
        %1100 = vmatprep.subr.bf16.mxu0 0
        %1101 = vmatpush1.bf16.xpose.msra.mxu0 0
        %1102 = vmatprep.subr.bf16.mxu0 0
        %1103 = vmatpush1.bf16.xpose.msra.mxu0 0
        %1104 = vmatprep.subr.bf16.mxu0 0
        %1105 = vmatpush1.bf16.xpose.msra.mxu0 0
        %1106 = vmatprep.subr.bf16.mxu0 0
        %1107 = vmatpush1.bf16.xpose.msra.mxu0 0
        %1108 = vmatprep.subr.bf16.mxu0 0
        %1109 = vmatpush1.bf16.xpose.msra.mxu0 0
        %1110 = vmatprep.subr.bf16.mxu0 0
        %1111 = vmatpush1.bf16.xpose.msra.mxu0 0
        %1112 = vmatprep.subr.bf16.mxu0 0
        %1113 = vmatpush1.bf16.xpose.msra.mxu0 0
        %1114 = vmatprep.subr.bf16.mxu0 0
        %1115 = vmatpush1.bf16.xpose.msra.mxu0 0
        %1116 = vmatprep.subr.bf16.mxu0 0
        %1117 = vmatpush1.bf16.xpose.msra.mxu0 0
        %1118 = vmatprep.subr.bf16.mxu0 0
        %1119 = vmatpush1.bf16.xpose.msra.mxu0 0
        %1120 = vmatprep.subr.bf16.mxu0 0
        %1121 = vmatpush1.bf16.xpose.msra.mxu0 0
        %1122 = vmatprep.subr.bf16.mxu0 0
        %1123 = vmatpush1.bf16.xpose.msra.mxu0 0
        %1124 = vmatprep.subr.bf16.mxu0 0
        %1125 = vmatpush1.bf16.xpose.msra.mxu0 0
        %1126 = vmatprep.mubr.bf16.mxu0 0
        %1127 = vmatmul.mubr.bf16.gmra.mrb[0].mxu0 %v1089
        %v1128 = vpop.f32.mrb[0].mxu0
        %v1129 = vadd.f32 0.0, %v1128
        %v1130 = vpop.f32.mrb[0].mxu0
        %v1131 = vpop.f32.mrb[0].mxu0
        %v1132 = vpop.f32.mrb[0].mxu0
        %1133 = vdwg.mxu0
        %v1135 = vsel %vm1041, %v735, 0
        %v1138 = vsel %vm1041, %v887, 0
        %1140 = vmatprep.subr.bf16.mxu0 0
        %1141 = vmatpush1.bf16.xpose.msra.mxu0 %v1138
        %1142 = vmatprep.subr.bf16.mxu0 0
        %1143 = vmatpush1.bf16.xpose.msra.mxu0 0
        %1144 = vmatprep.subr.bf16.mxu0 0
        %1145 = vmatpush1.bf16.xpose.msra.mxu0 0
        %1146 = vmatprep.subr.bf16.mxu0 0
        %1147 = vmatpush1.bf16.xpose.msra.mxu0 0
        %1148 = vmatprep.subr.bf16.mxu0 0
        %1149 = vmatpush1.bf16.xpose.msra.mxu0 0
        %1150 = vmatprep.subr.bf16.mxu0 0
        %1151 = vmatpush1.bf16.xpose.msra.mxu0 0
        %1152 = vmatprep.subr.bf16.mxu0 0
        %1153 = vmatpush1.bf16.xpose.msra.mxu0 0
        %1154 = vmatprep.subr.bf16.mxu0 0
        %1155 = vmatpush1.bf16.xpose.msra.mxu0 0
        %1156 = vmatprep.subr.bf16.mxu0 0
        %1157 = vmatpush1.bf16.xpose.msra.mxu0 0
        %1158 = vmatprep.subr.bf16.mxu0 0
        %1159 = vmatpush1.bf16.xpose.msra.mxu0 0
        %1160 = vmatprep.subr.bf16.mxu0 0
        %1161 = vmatpush1.bf16.xpose.msra.mxu0 0
        %1162 = vmatprep.subr.bf16.mxu0 0
        %1163 = vmatpush1.bf16.xpose.msra.mxu0 0
        %1164 = vmatprep.subr.bf16.mxu0 0
        %1165 = vmatpush1.bf16.xpose.msra.mxu0 0
        %1166 = vmatprep.subr.bf16.mxu0 0
        %1167 = vmatpush1.bf16.xpose.msra.mxu0 0
        %1168 = vmatprep.subr.bf16.mxu0 0
        %1169 = vmatpush1.bf16.xpose.msra.mxu0 0
        %1170 = vmatprep.subr.bf16.mxu0 0
        %1171 = vmatpush1.bf16.xpose.msra.mxu0 0
        %1172 = vmatprep.mubr.bf16.mxu0 0
        %1173 = vmatmul.mubr.bf16.gmra.mrb[0].mxu0 %v1135
        %v1174 = vpop.f32.mrb[0].mxu0
        %v1175 = vadd.f32 0.0, %v1174
        %v1176 = vpop.f32.mrb[0].mxu0
        %v1177 = vpop.f32.mrb[0].mxu0
        %v1178 = vpop.f32.mrb[0].mxu0
        %1179 = vdwg.mxu0
        %v1181 = vsel %vm1041, %v736, 0
        %v1184 = vsel %vm1041, %v888, 0
        %1186 = vmatprep.subr.bf16.mxu0 0
        %1187 = vmatpush1.bf16.xpose.msra.mxu0 %v1184
        %1188 = vmatprep.subr.bf16.mxu0 0
        %1189 = vmatpush1.bf16.xpose.msra.mxu0 0
        %1190 = vmatprep.subr.bf16.mxu0 0
        %1191 = vmatpush1.bf16.xpose.msra.mxu0 0
        %1192 = vmatprep.subr.bf16.mxu0 0
        %1193 = vmatpush1.bf16.xpose.msra.mxu0 0
        %1194 = vmatprep.subr.bf16.mxu0 0
        %1195 = vmatpush1.bf16.xpose.msra.mxu0 0
        %1196 = vmatprep.subr.bf16.mxu0 0
        %1197 = vmatpush1.bf16.xpose.msra.mxu0 0
        %1198 = vmatprep.subr.bf16.mxu0 0
        %1199 = vmatpush1.bf16.xpose.msra.mxu0 0
        %1200 = vmatprep.subr.bf16.mxu0 0
        %1201 = vmatpush1.bf16.xpose.msra.mxu0 0
        %1202 = vmatprep.subr.bf16.mxu0 0
        %1203 = vmatpush1.bf16.xpose.msra.mxu0 0
        %1204 = vmatprep.subr.bf16.mxu0 0
        %1205 = vmatpush1.bf16.xpose.msra.mxu0 0
        %1206 = vmatprep.subr.bf16.mxu0 0
        %1207 = vmatpush1.bf16.xpose.msra.mxu0 0
        %1208 = vmatprep.subr.bf16.mxu0 0
        %1209 = vmatpush1.bf16.xpose.msra.mxu0 0
        %1210 = vmatprep.subr.bf16.mxu0 0
        %1211 = vmatpush1.bf16.xpose.msra.mxu0 0
        %1212 = vmatprep.subr.bf16.mxu0 0
        %1213 = vmatpush1.bf16.xpose.msra.mxu0 0
        %1214 = vmatprep.subr.bf16.mxu0 0
        %1215 = vmatpush1.bf16.xpose.msra.mxu0 0
        %1216 = vmatprep.subr.bf16.mxu0 0
        %1217 = vmatpush1.bf16.xpose.msra.mxu0 0
        %1218 = vmatprep.mubr.bf16.mxu0 0
        %1219 = vmatmul.mubr.bf16.gmra.mrb[0].mxu0 %v1181
        %v1220 = vpop.f32.mrb[0].mxu0
        %v1221 = vadd.f32 0.0, %v1220
        %v1222 = vpop.f32.mrb[0].mxu0
        %v1223 = vpop.f32.mrb[0].mxu0
        %v1224 = vpop.f32.mrb[0].mxu0
        %1225 = vdwg.mxu0
        %v1226 = vsel %vm1041, %v1083, -inf
        %1227 = vmax.xlane.f32.xlu0 %v1226
        %v1228 = vpop.xlane.xlu0 %1227
        %v1229 = vsel %vm1041, %v1129, -inf
        %1230 = vmax.xlane.f32.xlu0 %v1229
        %v1231 = vpop.xlane.xlu0 %1230
        %v1232 = vsel %vm1041, %v1175, -inf
        %1233 = vmax.xlane.f32.xlu0 %v1232
        %v1234 = vpop.xlane.xlu0 %1233
        %v1235 = vsel %vm1041, %v1221, -inf
        %1236 = vmax.xlane.f32.xlu0 %v1235
        %v1237 = vpop.xlane.xlu0 %1236
        %v1238 = vsub.f32 %v1083, %v1228
        %v1239 = vsub.f32 %v1129, %v1231
        %v1240 = vsub.f32 %v1175, %v1234
        %v1241 = vsub.f32 %v1221, %v1237
        %v1242 = vmul.f32 %v1238, 1.442695
        %v1243 = vpow.pop %v1242
        %v1244 = vmul.f32 %v1239, 1.442695
        %v1245 = vpow.pop %v1244
        %v1246 = vmul.f32 %v1240, 1.442695
        %v1247 = vpow.pop %v1246
        %v1248 = vmul.f32 %v1241, 1.442695
        %v1249 = vpow.pop %v1248
        %v1250 = vsel %vm1041, %v1243, 0.0
        %1251 = vadd.xlane.f32.xlu0 %v1250
        %v1252 = vpop.xlane.xlu0 %1251
        %v1253 = vsel %vm1041, %v1245, 0.0
        %1254 = vadd.xlane.f32.xlu0 %v1253
        %v1255 = vpop.xlane.xlu0 %1254
        %v1256 = vsel %vm1041, %v1247, 0.0
        %1257 = vadd.xlane.f32.xlu0 %v1256
        %v1258 = vpop.xlane.xlu0 %1257
        %v1259 = vsel %vm1041, %v1249, 0.0
        %1260 = vadd.xlane.f32.xlu0 %v1259
        %v1261 = vpop.xlane.xlu0 %1260
        %v1262 = vpack.c.bf16 %v1243, %v1243
        %v1263 = vpack.c.bf16 %v1245, %v1245
        %v1264 = vpack.c.bf16 %v1247, %v1247
        %v1265 = vpack.c.bf16 %v1249, %v1249
        %v1267 = vsel %vm1041, %v1262, 0
        %vm1269 = vcmask 1043456
        %v1271 = vsel %vm1269, %v1037, 0
        %1273 = vmatprep.subr.bf16.mxu0 0
        %1274 = vmatpush1.bf16.msra.mxu0 %v1271
        %1275 = vmatprep.subr.bf16.mxu0 0
        %1276 = vmatpush1.bf16.msra.mxu0 0
        %1277 = vmatprep.subr.bf16.mxu0 0
        %1278 = vmatpush1.bf16.msra.mxu0 0
        %1279 = vmatprep.subr.bf16.mxu0 0
        %1280 = vmatpush1.bf16.msra.mxu0 0
        %1281 = vmatprep.subr.bf16.mxu0 0
        %1282 = vmatpush1.bf16.msra.mxu0 0
        %1283 = vmatprep.subr.bf16.mxu0 0
        %1284 = vmatpush1.bf16.msra.mxu0 0
        %1285 = vmatprep.subr.bf16.mxu0 0
        %1286 = vmatpush1.bf16.msra.mxu0 0
        %1287 = vmatprep.subr.bf16.mxu0 0
        %1288 = vmatpush1.bf16.msra.mxu0 0
        %1289 = vmatprep.subr.bf16.mxu0 0
        %1290 = vmatpush1.bf16.msra.mxu0 0
        %1291 = vmatprep.subr.bf16.mxu0 0
        %1292 = vmatpush1.bf16.msra.mxu0 0
        %1293 = vmatprep.subr.bf16.mxu0 0
        %1294 = vmatpush1.bf16.msra.mxu0 0
        %1295 = vmatprep.subr.bf16.mxu0 0
        %1296 = vmatpush1.bf16.msra.mxu0 0
        %1297 = vmatprep.subr.bf16.mxu0 0
        %1298 = vmatpush1.bf16.msra.mxu0 0
        %1299 = vmatprep.subr.bf16.mxu0 0
        %1300 = vmatpush1.bf16.msra.mxu0 0
        %1301 = vmatprep.subr.bf16.mxu0 0
        %1302 = vmatpush1.bf16.msra.mxu0 0
        %1303 = vmatprep.subr.bf16.mxu0 0
        %1304 = vmatpush1.bf16.msra.mxu0 0
        %1305 = vmatprep.mubr.bf16.mxu0 0
        %1306 = vmatmul.mubr.bf16.gmra.mrb[0].mxu0 %v1267
        %v1307 = vpop.f32.mrb[0].mxu0
        %v1308 = vadd.f32 0.0, %v1307
        %v1309 = vpop.f32.mrb[0].mxu0
        %v1310 = vpop.f32.mrb[0].mxu0
        %v1311 = vpop.f32.mrb[0].mxu0
        %1312 = vdwg.mxu0
        %v1314 = vsel %vm1041, %v1263, 0
        %v1317 = vsel %vm1269, %v1038, 0
        %1319 = vmatprep.subr.bf16.mxu0 0
        %1320 = vmatpush1.bf16.msra.mxu0 %v1317
        %1321 = vmatprep.subr.bf16.mxu0 0
        %1322 = vmatpush1.bf16.msra.mxu0 0
        %1323 = vmatprep.subr.bf16.mxu0 0
        %1324 = vmatpush1.bf16.msra.mxu0 0
        %1325 = vmatprep.subr.bf16.mxu0 0
        %1326 = vmatpush1.bf16.msra.mxu0 0
        %1327 = vmatprep.subr.bf16.mxu0 0
        %1328 = vmatpush1.bf16.msra.mxu0 0
        %1329 = vmatprep.subr.bf16.mxu0 0
        %1330 = vmatpush1.bf16.msra.mxu0 0
        %1331 = vmatprep.subr.bf16.mxu0 0
        %1332 = vmatpush1.bf16.msra.mxu0 0
        %1333 = vmatprep.subr.bf16.mxu0 0
        %1334 = vmatpush1.bf16.msra.mxu0 0
        %1335 = vmatprep.subr.bf16.mxu0 0
        %1336 = vmatpush1.bf16.msra.mxu0 0
        %1337 = vmatprep.subr.bf16.mxu0 0
        %1338 = vmatpush1.bf16.msra.mxu0 0
        %1339 = vmatprep.subr.bf16.mxu0 0
        %1340 = vmatpush1.bf16.msra.mxu0 0
        %1341 = vmatprep.subr.bf16.mxu0 0
        %1342 = vmatpush1.bf16.msra.mxu0 0
        %1343 = vmatprep.subr.bf16.mxu0 0
        %1344 = vmatpush1.bf16.msra.mxu0 0
        %1345 = vmatprep.subr.bf16.mxu0 0
        %1346 = vmatpush1.bf16.msra.mxu0 0
        %1347 = vmatprep.subr.bf16.mxu0 0
        %1348 = vmatpush1.bf16.msra.mxu0 0
        %1349 = vmatprep.subr.bf16.mxu0 0
        %1350 = vmatpush1.bf16.msra.mxu0 0
        %1351 = vmatprep.mubr.bf16.mxu0 0
        %1352 = vmatmul.mubr.bf16.gmra.mrb[0].mxu0 %v1314
        %v1353 = vpop.f32.mrb[0].mxu0
        %v1354 = vadd.f32 0.0, %v1353
        %v1355 = vpop.f32.mrb[0].mxu0
        %v1356 = vpop.f32.mrb[0].mxu0
        %v1357 = vpop.f32.mrb[0].mxu0
        %1358 = vdwg.mxu0
        %v1360 = vsel %vm1041, %v1264, 0
        %v1363 = vsel %vm1269, %v1039, 0
        %1365 = vmatprep.subr.bf16.mxu0 0
        %1366 = vmatpush1.bf16.msra.mxu0 %v1363
        %1367 = vmatprep.subr.bf16.mxu0 0
        %1368 = vmatpush1.bf16.msra.mxu0 0
        %1369 = vmatprep.subr.bf16.mxu0 0
        %1370 = vmatpush1.bf16.msra.mxu0 0
        %1371 = vmatprep.subr.bf16.mxu0 0
        %1372 = vmatpush1.bf16.msra.mxu0 0
        %1373 = vmatprep.subr.bf16.mxu0 0
        %1374 = vmatpush1.bf16.msra.mxu0 0
        %1375 = vmatprep.subr.bf16.mxu0 0
        %1376 = vmatpush1.bf16.msra.mxu0 0
        %1377 = vmatprep.subr.bf16.mxu0 0
        %1378 = vmatpush1.bf16.msra.mxu0 0
        %1379 = vmatprep.subr.bf16.mxu0 0
        %1380 = vmatpush1.bf16.msra.mxu0 0
        %1381 = vmatprep.subr.bf16.mxu0 0
        %1382 = vmatpush1.bf16.msra.mxu0 0
        %1383 = vmatprep.subr.bf16.mxu0 0
        %1384 = vmatpush1.bf16.msra.mxu0 0
        %1385 = vmatprep.subr.bf16.mxu0 0
        %1386 = vmatpush1.bf16.msra.mxu0 0
        %1387 = vmatprep.subr.bf16.mxu0 0
        %1388 = vmatpush1.bf16.msra.mxu0 0
        %1389 = vmatprep.subr.bf16.mxu0 0
        %1390 = vmatpush1.bf16.msra.mxu0 0
        %1391 = vmatprep.subr.bf16.mxu0 0
        %1392 = vmatpush1.bf16.msra.mxu0 0
        %1393 = vmatprep.subr.bf16.mxu0 0
        %1394 = vmatpush1.bf16.msra.mxu0 0
        %1395 = vmatprep.subr.bf16.mxu0 0
        %1396 = vmatpush1.bf16.msra.mxu0 0
        %1397 = vmatprep.mubr.bf16.mxu0 0
        %1398 = vmatmul.mubr.bf16.gmra.mrb[0].mxu0 %v1360
        %v1399 = vpop.f32.mrb[0].mxu0
        %v1400 = vadd.f32 0.0, %v1399
        %v1401 = vpop.f32.mrb[0].mxu0
        %v1402 = vpop.f32.mrb[0].mxu0
        %v1403 = vpop.f32.mrb[0].mxu0
        %1404 = vdwg.mxu0
        %v1406 = vsel %vm1041, %v1265, 0
        %v1409 = vsel %vm1269, %v1040, 0
        %1411 = vmatprep.subr.bf16.mxu0 0
        %1412 = vmatpush1.bf16.msra.mxu0 %v1409
        %1413 = vmatprep.subr.bf16.mxu0 0
        %1414 = vmatpush1.bf16.msra.mxu0 0
        %1415 = vmatprep.subr.bf16.mxu0 0
        %1416 = vmatpush1.bf16.msra.mxu0 0
        %1417 = vmatprep.subr.bf16.mxu0 0
        %1418 = vmatpush1.bf16.msra.mxu0 0
        %1419 = vmatprep.subr.bf16.mxu0 0
        %1420 = vmatpush1.bf16.msra.mxu0 0
        %1421 = vmatprep.subr.bf16.mxu0 0
        %1422 = vmatpush1.bf16.msra.mxu0 0
        %1423 = vmatprep.subr.bf16.mxu0 0
        %1424 = vmatpush1.bf16.msra.mxu0 0
        %1425 = vmatprep.subr.bf16.mxu0 0
        %1426 = vmatpush1.bf16.msra.mxu0 0
        %1427 = vmatprep.subr.bf16.mxu0 0
        %1428 = vmatpush1.bf16.msra.mxu0 0
        %1429 = vmatprep.subr.bf16.mxu0 0
        %1430 = vmatpush1.bf16.msra.mxu0 0
        %1431 = vmatprep.subr.bf16.mxu0 0
        %1432 = vmatpush1.bf16.msra.mxu0 0
        %1433 = vmatprep.subr.bf16.mxu0 0
        %1434 = vmatpush1.bf16.msra.mxu0 0
        %1435 = vmatprep.subr.bf16.mxu0 0
        %1436 = vmatpush1.bf16.msra.mxu0 0
        %1437 = vmatprep.subr.bf16.mxu0 0
        %1438 = vmatpush1.bf16.msra.mxu0 0
        %1439 = vmatprep.subr.bf16.mxu0 0
        %1440 = vmatpush1.bf16.msra.mxu0 0
        %1441 = vmatprep.subr.bf16.mxu0 0
        %1442 = vmatpush1.bf16.msra.mxu0 0
        %1443 = vmatprep.mubr.bf16.mxu0 0
        %1444 = vmatmul.mubr.bf16.gmra.mrb[0].mxu0 %v1406
        %v1445 = vpop.f32.mrb[0].mxu0
        %v1446 = vadd.f32 0.0, %v1445
        %v1447 = vpop.f32.mrb[0].mxu0
        %v1448 = vpop.f32.mrb[0].mxu0
        %v1449 = vpop.f32.mrb[0].mxu0
        %1450 = vdwg.mxu0
        %v1451 = vrcp.pop %v1252
        %v1452 = vrcp.pop %v1255
        %v1453 = vrcp.pop %v1258
        %v1454 = vrcp.pop %v1261
        %v1455 = vmul.f32 %v1308, %v1451
        %v1456 = vmul.f32 %v1354, %v1452
        %v1457 = vmul.f32 %v1400, %v1453
        %v1458 = vmul.f32 %v1446, %v1454
        %v1459 = vcombine.low %v1455, %v1457
        %v1460 = vcombine.high %v1455, %v1457
        %v1462 = vunpack.c.l.s4 1983009808
        %v1463 = vunpack.c.0.s8 %v1462
        %v1464 = vlaneseq
        %v1465 = vshrl.u32 %v1464, 7
        %v1466 = vsub.s32 %v1463, %v1465
        %v1467 = vrot.slane %v1459, %v1466
        %v1469 = vunpack.c.l.s4 1983009808
        %v1470 = vunpack.c.0.s8 %v1469
        %v1471 = vlaneseq
        %v1472 = vshrl.u32 %v1471, 7
        %v1473 = vsub.s32 %v1470, %v1472
        %v1474 = vrot.slane %v1460, %v1473
        %v1475 = vcombine.low %v1456, %v1458
        %v1476 = vcombine.high %v1456, %v1458
        %v1478 = vunpack.c.l.s4 1983009808
        %v1479 = vunpack.c.0.s8 %v1478
        %v1480 = vlaneseq
        %v1481 = vshrl.u32 %v1480, 7
        %v1482 = vsub.s32 %v1479, %v1481
        %v1483 = vrot.slane %v1475, %v1482
        %v1485 = vunpack.c.l.s4 1983009808
        %v1486 = vunpack.c.0.s8 %v1485
        %v1487 = vlaneseq
        %v1488 = vshrl.u32 %v1487, 7
        %v1489 = vsub.s32 %v1486, %v1488
        %v1490 = vrot.slane %v1476, %v1489
        %v1491 = vcombine.low %v1467, %v1483
        %v1492 = vcombine.high %v1467, %v1483
        %v1494 = vunpack.c.l.s4 1934713408
        %v1495 = vunpack.c.0.s8 %v1494
        %v1496 = vlaneseq
        %v1497 = vshrl.u32 %v1496, 7
        %v1498 = vsub.s32 %v1495, %v1497
        %v1499 = vrot.slane %v1491, %v1498
        %v1501 = vunpack.c.l.s4 1934713408
        %v1502 = vunpack.c.0.s8 %v1501
        %v1503 = vlaneseq
        %v1504 = vshrl.u32 %v1503, 7
        %v1505 = vsub.s32 %v1502, %v1504
        %v1506 = vrot.slane %v1492, %v1505
        %v1507 = vcombine.low %v1474, %v1490
        %v1508 = vcombine.high %v1474, %v1490
        %v1510 = vunpack.c.l.s4 1934713408
        %v1511 = vunpack.c.0.s8 %v1510
        %v1512 = vlaneseq
        %v1513 = vshrl.u32 %v1512, 7
        %v1514 = vsub.s32 %v1511, %v1513
        %v1515 = vrot.slane %v1507, %v1514
        %v1517 = vunpack.c.l.s4 1934713408
        %v1518 = vunpack.c.0.s8 %v1517
        %v1519 = vlaneseq
        %v1520 = vshrl.u32 %v1519, 7
        %v1521 = vsub.s32 %v1518, %v1520
        %v1522 = vrot.slane %v1508, %v1521
        %v1523 = vcombine.high %v1499, 0.0
        %v1524 = vcombine.high %v1506, 0.0
        %v1525 = vcombine.high %v1515, 0.0
        %v1526 = vcombine.high %v1522, 0.0
        %v1527 = vcombine.low %v1499, %v1506
        %v1529 = vunpack.c.l.s4 1983009808
        %v1530 = vunpack.c.0.s8 %v1529
        %v1531 = vlaneseq
        %v1532 = vshrl.u32 %v1531, 7
        %v1533 = vsub.s32 %v1530, %v1532
        %v1534 = vrot.slane %v1527, %v1533
        %v1535 = vcombine.low %v1523, %v1524
        %v1537 = vunpack.c.l.s4 1983009808
        %v1538 = vunpack.c.0.s8 %v1537
        %v1539 = vlaneseq
        %v1540 = vshrl.u32 %v1539, 7
        %v1541 = vsub.s32 %v1538, %v1540
        %v1542 = vrot.slane %v1535, %v1541
        %v1543 = vcombine.low %v1515, %v1522
        %v1545 = vunpack.c.l.s4 1983009808
        %v1546 = vunpack.c.0.s8 %v1545
        %v1547 = vlaneseq
        %v1548 = vshrl.u32 %v1547, 7
        %v1549 = vsub.s32 %v1546, %v1548
        %v1550 = vrot.slane %v1543, %v1549
        %v1551 = vcombine.low %v1525, %v1526
        %v1553 = vunpack.c.l.s4 1983009808
        %v1554 = vunpack.c.0.s8 %v1553
        %v1555 = vlaneseq
        %v1556 = vshrl.u32 %v1555, 7
        %v1557 = vsub.s32 %v1554, %v1556
        %v1558 = vrot.slane %v1551, %v1557
        %v1559 = vcombine.low %v1534, %v1542
        %v1560 = vcombine.high %v1534, %v1542
        %v1562 = vunpack.c.l.s4 1934713408
        %v1563 = vunpack.c.0.s8 %v1562
        %v1564 = vlaneseq
        %v1565 = vshrl.u32 %v1564, 7
        %v1566 = vsub.s32 %v1563, %v1565
        %v1567 = vrot.slane %v1559, %v1566
        %v1569 = vunpack.c.l.s4 1934713408
        %v1570 = vunpack.c.0.s8 %v1569
        %v1571 = vlaneseq
        %v1572 = vshrl.u32 %v1571, 7
        %v1573 = vsub.s32 %v1570, %v1572
        %v1574 = vrot.slane %v1560, %v1573
        %v1575 = vcombine.low %v1550, %v1558
        %v1576 = vcombine.high %v1550, %v1558
        %v1578 = vunpack.c.l.s4 1934713408
        %v1579 = vunpack.c.0.s8 %v1578
        %v1580 = vlaneseq
        %v1581 = vshrl.u32 %v1580, 7
        %v1582 = vsub.s32 %v1579, %v1581
        %v1583 = vrot.slane %v1575, %v1582
        %v1585 = vunpack.c.l.s4 1934713408
        %v1586 = vunpack.c.0.s8 %v1585
        %v1587 = vlaneseq
        %v1588 = vshrl.u32 %v1587, 7
        %v1589 = vsub.s32 %v1586, %v1588
        %v1590 = vrot.slane %v1576, %v1589
        %v1591 = vcombine.low %v1567, %v1583
        %v1592 = vcombine.high %v1567, %v1583
        %v1593 = vcombine.low %v1574, %v1590
        %v1594 = vcombine.high %v1574, %v1590
        %1596 = vrot.lane.b32.xlu0 %v1592, 8
        %v1597 = vpop.permute.xlu0 %1596
        %1600 = vrot.lane.b32.xlu0 %v1593, 16
        %v1601 = vpop.permute.xlu0 %1600
        %1604 = vrot.lane.b32.xlu0 %v1594, 24
        %v1605 = vpop.permute.xlu0 %1604
        %v1607 = vsel %vm1041, %v1591, %v1597
        %vm1608 = vcmask 130048
        %v1609 = vsel %vm1608, %v1607, %v1601
        %vm1610 = vcmask 195584
        %v1611 = vsel %vm1610, %v1609, %v1605
        %v1612 = vpack.c.bf16 %v1611, %v1611
        %v1613 = vld [vmem:[%s5] sm:$0xf]
        %v1614 = vld [vmem:[%s5 + $0x4] sm:$0xf]
        %v1615 = vld [vmem:[%s5 + $0x8] sm:$0xf]
        %v1616 = vld [vmem:[%s5 + $0xc] sm:$0xf]
        %v1617 = vld [vmem:[#allocation5] sm:$0x1]
        %v1619 = vlaneseq
        %v1620 = vshrl.u32 %v1619, 7
        %v1621 = vsub.s32 0, %v1620
        %v1622 = vrot.slane %v1617, %v1621
        %v1628 = vunpack.c.l.b16 %v1613
        %v1629 = vunpack.c.l.b16 %v1614
        %v1630 = vunpack.c.l.b16 %v1615
        %v1631 = vunpack.c.l.b16 %v1616
        %v1632 = vpack.c.b16 %v1629, %v1628
        %v1633 = vpack.c.b16 %v1631, %v1630
        %v1637 = vsel %vm489, %v1612, 0
        %1639 = vmatprep.subr.bf16.mxu0 0
        %1640 = vmatpush1.bf16.msra.mxu0 %v1632
        %1641 = vmatprep.subr.bf16.mxu0 0
        %1642 = vmatpush1.bf16.msra.mxu0 %v1633
        %1643 = vmatprep.subr.bf16.mxu0 0
        %1644 = vmatpush1.bf16.msra.mxu0 0
        %1645 = vmatprep.subr.bf16.mxu0 0
        %1646 = vmatpush1.bf16.msra.mxu0 0
        %1647 = vmatprep.subr.bf16.mxu0 0
        %1648 = vmatpush1.bf16.msra.mxu0 0
        %1649 = vmatprep.subr.bf16.mxu0 0
        %1650 = vmatpush1.bf16.msra.mxu0 0
        %1651 = vmatprep.subr.bf16.mxu0 0
        %1652 = vmatpush1.bf16.msra.mxu0 0
        %1653 = vmatprep.subr.bf16.mxu0 0
        %1654 = vmatpush1.bf16.msra.mxu0 0
        %1655 = vmatprep.subr.bf16.mxu0 0
        %1656 = vmatpush1.bf16.msra.mxu0 0
        %1657 = vmatprep.subr.bf16.mxu0 0
        %1658 = vmatpush1.bf16.msra.mxu0 0
        %1659 = vmatprep.subr.bf16.mxu0 0
        %1660 = vmatpush1.bf16.msra.mxu0 0
        %1661 = vmatprep.subr.bf16.mxu0 0
        %1662 = vmatpush1.bf16.msra.mxu0 0
        %1663 = vmatprep.subr.bf16.mxu0 0
        %1664 = vmatpush1.bf16.msra.mxu0 0
        %1665 = vmatprep.subr.bf16.mxu0 0
        %1666 = vmatpush1.bf16.msra.mxu0 0
        %1667 = vmatprep.subr.bf16.mxu0 0
        %1668 = vmatpush1.bf16.msra.mxu0 0
        %1669 = vmatprep.subr.bf16.mxu0 0
        %1670 = vmatpush1.bf16.msra.mxu0 0
        %1671 = vmatprep.mubr.bf16.mxu0 0
        %1672 = vmatmul.mubr.bf16.gmra.mrb[0].mxu0 %v1637
        %v1673 = vpop.f32.mrb[0].mxu0
        %v1674 = vadd.f32 %v1622, %v1673
        %v1675 = vpop.f32.mrb[0].mxu0
        %v1676 = vpop.f32.mrb[0].mxu0
        %v1677 = vpop.f32.mrb[0].mxu0
        %1678 = vdwg.mxu0
        %v1679 = vadd.f32 %v488, %v1674
        %v1680 = vsel %vm489, %v1679, 0.0
        %1681 = vadd.xlane.f32.xlu0 %v1680
        %v1682 = vpop.xlane.xlu0 %1681
        %v1683 = vmul.f32 %v1682, %v493
        %v1684 = vsub.f32 %v1679, %v1683
        %v1685 = vmul.f32 %v1684, %v1684
        %v1686 = vsel %vm489, %v1685, 0.0
        %1687 = vadd.xlane.f32.xlu0 %v1686
        %v1688 = vpop.xlane.xlu0 %1687
        %v1689 = vmul.f32 %v1688, %v493
        %v1690 = vadd.f32 %v1689, 1e-05
        %v1691 = vrsqrt.pop %v1690
        %v1692 = vmul.f32 %v1684, %v1691
        %v1693 = vld [vmem:[#allocation7] sm:$0x1]
        %v1695 = vlaneseq
        %v1696 = vshrl.u32 %v1695, 7
        %v1697 = vsub.s32 0, %v1696
        %v1698 = vrot.slane %v1693, %v1697
        %v1700 = vmul.f32 %v1692, %v1698
        %v1701 = vld [vmem:[#allocation8] sm:$0x1]
        %v1703 = vlaneseq
        %v1704 = vshrl.u32 %v1703, 7
        %v1705 = vsub.s32 0, %v1704
        %v1706 = vrot.slane %v1701, %v1705
        %v1708 = vadd.f32 %v1700, %v1706
        %v1709 = vpack.c.bf16 %v1708, %v1708
        %v1710 = vld [vmem:[%s9] sm:$0xf]
        %v1711 = vld [vmem:[%s9 + $0x4] sm:$0xf]
        %v1712 = vld [vmem:[%s9 + $0x8] sm:$0xf]
        %v1713 = vld [vmem:[%s9 + $0xc] sm:$0xf]
        %v1714 = vld [vmem:[%s10] sm:$0x1]
        %v1716 = vlaneseq
        %v1717 = vshrl.u32 %v1716, 7
        %v1718 = vsub.s32 0, %v1717
        %v1719 = vrot.slane %v1714, %v1718
        %v1725 = vunpack.c.l.b16 %v1710
        %v1726 = vunpack.c.l.b16 %v1711
        %v1727 = vunpack.c.l.b16 %v1712
        %v1728 = vunpack.c.l.b16 %v1713
        %v1729 = vpack.c.b16 %v1726, %v1725
        %v1730 = vpack.c.b16 %v1728, %v1727
        %v1734 = vsel %vm489, %v1709, 0
        %1736 = vmatprep.subr.bf16.mxu0 0
        %1737 = vmatpush1.bf16.msra.mxu0 %v1729
        %1738 = vmatprep.subr.bf16.mxu0 0
        %1739 = vmatpush1.bf16.msra.mxu0 %v1730
        %1740 = vmatprep.subr.bf16.mxu0 0
        %1741 = vmatpush1.bf16.msra.mxu0 0
        %1742 = vmatprep.subr.bf16.mxu0 0
        %1743 = vmatpush1.bf16.msra.mxu0 0
        %1744 = vmatprep.subr.bf16.mxu0 0
        %1745 = vmatpush1.bf16.msra.mxu0 0
        %1746 = vmatprep.subr.bf16.mxu0 0
        %1747 = vmatpush1.bf16.msra.mxu0 0
        %1748 = vmatprep.subr.bf16.mxu0 0
        %1749 = vmatpush1.bf16.msra.mxu0 0
        %1750 = vmatprep.subr.bf16.mxu0 0
        %1751 = vmatpush1.bf16.msra.mxu0 0
        %1752 = vmatprep.subr.bf16.mxu0 0
        %1753 = vmatpush1.bf16.msra.mxu0 0
        %1754 = vmatprep.subr.bf16.mxu0 0
        %1755 = vmatpush1.bf16.msra.mxu0 0
        %1756 = vmatprep.subr.bf16.mxu0 0
        %1757 = vmatpush1.bf16.msra.mxu0 0
        %1758 = vmatprep.subr.bf16.mxu0 0
        %1759 = vmatpush1.bf16.msra.mxu0 0
        %1760 = vmatprep.subr.bf16.mxu0 0
        %1761 = vmatpush1.bf16.msra.mxu0 0
        %1762 = vmatprep.subr.bf16.mxu0 0
        %1763 = vmatpush1.bf16.msra.mxu0 0
        %1764 = vmatprep.subr.bf16.mxu0 0
        %1765 = vmatpush1.bf16.msra.mxu0 0
        %1766 = vmatprep.subr.bf16.mxu0 0
        %1767 = vmatpush1.bf16.msra.mxu0 0
        %1768 = vmatprep.mubr.bf16.mxu0 0
        %1769 = vmatmul.mubr.bf16.gmra.mrb[0].mxu0 %v1734
        %v1770 = vpop.f32.mrb[0].mxu0
        %v1771 = vadd.f32 %v1719, %v1770
        %v1772 = vpop.f32.mrb[0].mxu0
        %v1773 = vpop.f32.mrb[0].mxu0
        %v1774 = vpop.f32.mrb[0].mxu0
        %1775 = vdwg.mxu0
        %v1776 = vmax.f32 %v1771, 0.0
        %v1777 = vpack.c.bf16 %v1776, %v1776
        %v1778 = vld [vmem:[%s11] sm:$0xf]
        %v1779 = vld [vmem:[%s11 + $0x4] sm:$0xf]
        %v1780 = vld [vmem:[%s11 + $0x8] sm:$0xf]
        %v1781 = vld [vmem:[%s11 + $0xc] sm:$0xf]
        %v1782 = vld [vmem:[%s11 + $0x10] sm:$0xf]
        %v1783 = vld [vmem:[%s11 + $0x14] sm:$0xf]
        %v1784 = vld [vmem:[%s11 + $0x18] sm:$0xf]
        %v1785 = vld [vmem:[%s11 + $0x1c] sm:$0xf]
        %v1786 = vld [vmem:[%s12] sm:$0x1]
        %v1788 = vlaneseq
        %v1789 = vshrl.u32 %v1788, 7
        %v1790 = vsub.s32 0, %v1789
        %v1791 = vrot.slane %v1786, %v1790
        %v1801 = vunpack.c.l.b16 %v1778
        %v1802 = vunpack.c.l.b16 %v1779
        %v1803 = vunpack.c.l.b16 %v1780
        %v1804 = vunpack.c.l.b16 %v1781
        %v1805 = vunpack.c.l.b16 %v1782
        %v1806 = vunpack.c.l.b16 %v1783
        %v1807 = vunpack.c.l.b16 %v1784
        %v1808 = vunpack.c.l.b16 %v1785
        %v1809 = vpack.c.b16 %v1802, %v1801
        %v1810 = vpack.c.b16 %v1804, %v1803
        %v1811 = vpack.c.b16 %v1806, %v1805
        %v1812 = vpack.c.b16 %v1808, %v1807
        %vm1817 = vcmask 523264
        %v1819 = vsel %vm1817, %v1777, 0
        %1821 = vmatprep.subr.bf16.mxu0 0
        %1822 = vmatpush1.bf16.msra.mxu0 %v1809
        %1823 = vmatprep.subr.bf16.mxu0 0
        %1824 = vmatpush1.bf16.msra.mxu0 %v1810
        %1825 = vmatprep.subr.bf16.mxu0 0
        %1826 = vmatpush1.bf16.msra.mxu0 %v1811
        %1827 = vmatprep.subr.bf16.mxu0 0
        %1828 = vmatpush1.bf16.msra.mxu0 %v1812
        %1829 = vmatprep.subr.bf16.mxu0 0
        %1830 = vmatpush1.bf16.msra.mxu0 0
        %1831 = vmatprep.subr.bf16.mxu0 0
        %1832 = vmatpush1.bf16.msra.mxu0 0
        %1833 = vmatprep.subr.bf16.mxu0 0
        %1834 = vmatpush1.bf16.msra.mxu0 0
        %1835 = vmatprep.subr.bf16.mxu0 0
        %1836 = vmatpush1.bf16.msra.mxu0 0
        %1837 = vmatprep.subr.bf16.mxu0 0
        %1838 = vmatpush1.bf16.msra.mxu0 0
        %1839 = vmatprep.subr.bf16.mxu0 0
        %1840 = vmatpush1.bf16.msra.mxu0 0
        %1841 = vmatprep.subr.bf16.mxu0 0
        %1842 = vmatpush1.bf16.msra.mxu0 0
        %1843 = vmatprep.subr.bf16.mxu0 0
        %1844 = vmatpush1.bf16.msra.mxu0 0
        %1845 = vmatprep.subr.bf16.mxu0 0
        %1846 = vmatpush1.bf16.msra.mxu0 0
        %1847 = vmatprep.subr.bf16.mxu0 0
        %1848 = vmatpush1.bf16.msra.mxu0 0
        %1849 = vmatprep.subr.bf16.mxu0 0
        %1850 = vmatpush1.bf16.msra.mxu0 0
        %1851 = vmatprep.subr.bf16.mxu0 0
        %1852 = vmatpush1.bf16.msra.mxu0 0
        %1853 = vmatprep.mubr.bf16.mxu0 0
        %1854 = vmatmul.mubr.bf16.gmra.mrb[0].mxu0 %v1819
        %v1855 = vpop.f32.mrb[0].mxu0
        %v1856 = vadd.f32 %v1791, %v1855
        %v1857 = vpop.f32.mrb[0].mxu0
        %v1858 = vpop.f32.mrb[0].mxu0
        %v1859 = vpop.f32.mrb[0].mxu0
        %1860 = vdwg.mxu0
        %v1861 = vadd.f32 %v1679, %v1856
        %1862 = vst.msk [vmem:[%s482] sm:$0xff] %vm489, %v1861
        %s1863 = sand.u32 %s316, 1
        %s1864 = scalar_lea.sflag [#allocation4], %s1863
        %s1865 = sand.u32 %s316, 1
        %s1866 = smul.addr %s1865, 8
        %s1867 = scalar_lea.vmem [#allocation10], %s1866
        // Predicated region
        $region89: #{tpu_custom_call.1} parent=71 // pred_check
          %p1868 = pneg %p326
        $region90: #{tpu_custom_call.1} parent=71 // pred_check_branch
          %1870 = sbr.rel (%p1868) target = $region92
        $region91: #{tpu_custom_call.1} parent=71 // pred_region
          %s1872 = ssub.s32 128, 128
          %1873 = vsyncadd %s1864, %s1872
          %s1874 = smul.addr %s30, 128
          %s1875 = scalar_lea.hbm %s13, %s1874
          %s1877 = sshll.u32 %s1867, 4
          %s1878 = int_to_ptr.vmem [resolvable:$true] %s1877
          %1880 = dma.vmem_to_hbm [thread:$0]  %s1878, 128, %s1875, %s1864
        $region92: #{tpu_custom_call.1} parent=71 // pred_fallthru
          _
      $region72: #{tpu_custom_call.1} parent=5 // pred_fallthru
        _
      %p1881 = scmp.le.s32.totalorder 2, %s25
      // Predicated region
      $region93: #{tpu_custom_call.1} parent=5 // pred_check
        %p1882 = pneg %p1881
      $region94: #{tpu_custom_call.1} parent=5 // pred_check_branch
        %1884 = sbr.rel (%p1882) target = $region96
      $region95: #{tpu_custom_call.1} parent=5 // pred_region
        %s1885 = ssub.s32 %s25, 2
        // Predicated region
        $region97: #{tpu_custom_call.1} parent=95 // pred_check
          %p1886 = pneg %p332
        $region98: #{tpu_custom_call.1} parent=95 // pred_check_branch
          %1888 = sbr.rel (%p1886) target = $region100
        $region99: #{tpu_custom_call.1} parent=95 // pred_region
          %s1889 = sand.u32 %s317, 1
          %s1890 = scalar_lea.sflag [#allocation4], %s1889
          %s1891 = sand.u32 %s317, 1
          %s1892 = smul.addr %s1891, 8
          %s1893 = scalar_lea.vmem [#allocation10], %s1892
          %1894 = dma.done %s1890, 128
        $region100: #{tpu_custom_call.1} parent=95 // pred_fallthru
          _
      $region96: #{tpu_custom_call.1} parent=5 // pred_fallthru
        _
    $region6: #{tpu_custom_call.1} parent=1 // loop_footer
      %s29 = sadd.s32 1, %s25
    $region7: #{tpu_custom_call.1} parent=1 // loop_footer_branch
      %24 = sbr.rel target = $region3
    $region8: #{tpu_custom_call.1} parent=1 // loop_exit
      _
    %1895 = vsyncpa [#allocation3], 1
    %s1896 = scalar_lea.sflag [#allocation3], 1
    %1897 = vsyncpa %s1896, 1
    %1898 = vsyncpa [#allocation6], 1
    %1899 = vsyncpa [#allocation9], 1
    %1900 = vsyncpa [#allocation4], 1
    %s1901 = scalar_lea.sflag [#allocation4], 1
    %1902 = vsyncpa %s1901, 1

</llo_original>
